<compile_context>
chip_gen: v7x
topology: tpu7x:2x2x1
jax: 0.10.0
libtpu: 0.0.40
codegen_flags: <defaults>
</compile_context>

<pallas_src>
import jax
import jax.numpy as jnp
from jax import lax
from jax.experimental import pallas as pl
from jax.experimental.pallas import tpu as pltpu

EPS = 1e-12       # 1 / word.INFINITY_NUMBER
NEG = -1e30       # finite "-inf" so exp underflows to 0 without NaN risk


def _make_kbgat_kernel(num_real_edges, leaky_slope=0.2):
    """Builds the kernel closed over the static real edge count."""

    def kernel(src_col_ref, tgt_col_ref, tgt_row_ref, rel_ref,
               p_src_ref, p_tgt_ref, w1r_ref, w2seg_ref, segT_ref,   # inputs
               out_ref, attn_ref,                                    # outputs
               nbr_sum, gmax_ref):                                   # scratch
        f32 = jnp.float32
        ph = pl.program_id(0)            # 0: online max + exp-sums, 1: aggregate
        t = pl.program_id(1)
        TE = rel_ref.shape[0]
        N_pad = p_src_ref.shape[0]

        # ---- one-hot edge<->node matrices (VPU build, MXU consume) ----
        src_col = src_col_ref[...]                                   # (TE, 1) i32
        tgt_col = tgt_col_ref[...]                                   # (TE, 1) i32
        tgt_row = tgt_row_ref[...]                                   # (1, TE) i32
        node_iota_l = lax.broadcasted_iota(jnp.int32, (TE, N_pad), 1)
        onehot_src = (node_iota_l == src_col).astype(f32)            # (TE, N)
        onehot_tgt = (node_iota_l == tgt_col).astype(f32)            # (TE, N)
        node_iota_s = lax.broadcasted_iota(jnp.int32, (N_pad, TE), 0)
        onehot_tgt_t = (node_iota_s == tgt_row).astype(f32)          # (N, TE)

        # ---- gather endpoint projections + relation projection (MXU) ----
        e_src = jnp.dot(onehot_src, p_src_ref[...], preferred_element_type=f32)
        e_tgt = jnp.dot(onehot_tgt, p_tgt_ref[...], preferred_element_type=f32)
        relp = jnp.dot(rel_ref[...], w1r_ref[...], preferred_element_type=f32)
        nsf = e_src + e_tgt + relp                                   # (TE, DV)

        # ---- head scores (weight2 folded into block-sum) + leaky relu ----
        scores = jnp.dot(nsf, w2seg_ref[...], preferred_element_type=f32)  # (TE,H)
        scores = jnp.where(scores > 0, scores, leaky_slope * scores)
        # mask padded edges of the last tile to a large-negative finite score
        edge_iota = lax.broadcasted_iota(jnp.int32, scores.shape, 0) + t * TE
        scores = jnp.where(edge_iota < num_real_edges, scores, NEG)

        @pl.when((ph == 0) & (t == 0))
        def _init():
            nbr_sum[...] = jnp.zeros_like(nbr_sum)
            gmax_ref[...] = jnp.full((1, 1), NEG, f32)

        # ---- phase 0: online global max + neighborhood exp-sums ----
        @pl.when(ph == 0)
        def _phase0():
            m_old = gmax_ref[...]                                    # (1, 1)
            m_new = jnp.maximum(m_old, jnp.max(scores, keepdims=True))
            ex = jnp.exp(scores - m_new)                             # (TE, H)
            scale = jnp.exp(m_old - m_new)                           # (1, 1)
            nbr_sum[...] = (scale * nbr_sum[...]
                            + jnp.dot(onehot_tgt_t, ex,
                                      preferred_element_type=f32))
            gmax_ref[...] = m_new

        @pl.when((ph == 1) & (t == 0))
        def _init_out():
            out_ref[...] = jnp.zeros_like(out_ref)

        # ---- phase 1: attention + weighted scatter-aggregation ----
        @pl.when(ph == 1)
        def _phase1():
            m = gmax_ref[...]                                        # global max
            ex = jnp.exp(scores - m)                                 # (TE, H)
            den = jnp.dot(onehot_tgt, nbr_sum[...],
                          preferred_element_type=f32)                # (TE, H)
            attn = ex / (den + EPS)
            attn_ref[...] = attn
            # broadcast attention over each head's d_v block (tiny K matmul)
            attn_exp = jnp.dot(attn, segT_ref[...],
                               preferred_element_type=f32)           # (TE, DV)
            weighted = nsf * attn_exp
            out_ref[...] += jnp.dot(onehot_tgt_t, weighted,
                                    preferred_element_type=f32)

    return kernel


def _round_up(x, m):
    return ((x + m - 1) // m) * m


def kbgat_forward(inp, relation_inp, edge_index, params, num_heads, d_v,
                  edge_tile=512):
    """Wrapper: weight splitting/folding + hoisted projections (XLA glue) and
    the 2-phase edge-tiled Pallas kernel."""
    N, D = inp.shape
    E, R = relation_inp.shape
    H = num_heads
    DV = H * d_v
    assert DV == D  # concat=True
    f32 = jnp.float32

    # tile / padding sizes (edge tile kept a multiple of 128 -> lane aligned)
    TE = min(edge_tile, _round_up(E, 128))
    TE = _round_up(TE, 128)
    E_pad = _round_up(E, TE)
    n_tiles = E_pad // TE
    N_pad = _round_up(N, 8)

    src = edge_index[0].astype(jnp.int32)
    tgt = edge_index[1].astype(jnp.int32)
    pad_e = E_pad - E
    src_p = jnp.pad(src, (0, pad_e))          # padded edges -> node 0 (masked)
    tgt_p = jnp.pad(tgt, (0, pad_e))
    rel_p = jnp.pad(relation_inp.astype(f32), ((0, pad_e), (0, 0)))
    src_col = src_p.reshape(E_pad, 1)
    tgt_col = tgt_p.reshape(E_pad, 1)
    tgt_row = tgt_p.reshape(1, E_pad)

    # W1 split into [src | tgt | rel] blocks
    W1 = params["weight1"].astype(f32)        # (DV, 2D + R)
    w1s_t = W1[:, :D].T                       # (D, DV)
    w1t_t = W1[:, D:2 * D].T                  # (D, DV)
    w1r_t = W1[:, 2 * D:].T                   # (R, DV)

    # hoisted node pre-projections -> resident VMEM tables in the kernel
    inp_pad = jnp.pad(inp.astype(f32), ((0, N_pad - N), (0, 0)))
    p_src = inp_pad @ w1s_t                   # (N_pad, DV)
    p_tgt = inp_pad @ w1t_t                   # (N_pad, DV)

    # weight2 folded into the per-head block-sum matrix; head broadcast matrix
    w2 = params["weight2"][:, :, 0].astype(f32)                # (H, d_v)
    rows = jnp.arange(DV)
    heads = rows // d_v
    w2seg = jnp.zeros((DV, H), f32).at[rows, heads].set(w2.reshape(-1))
    segT = jnp.zeros((H, DV), f32).at[heads, rows].set(1.0)

    const = lambda ph, t: (0, 0)
    tiled_e = lambda ph, t: (t, 0)
    tiled_row = lambda ph, t: (0, t)
    attn_map = lambda ph, t: (t * ph, 0)      # pinned dummy block in phase 0

    kernel = _make_kbgat_kernel(E)

    out_pad, attn_pad = pl.pallas_call(
        kernel,
        out_shape=(jax.ShapeDtypeStruct((N_pad, DV), f32),
                   jax.ShapeDtypeStruct((E_pad, H), f32)),
        grid_spec=pltpu.PrefetchScalarGridSpec(
            num_scalar_prefetch=0,
            grid=(2, n_tiles),
            in_specs=[
                pl.BlockSpec((TE, 1), tiled_e),     # src index column
                pl.BlockSpec((TE, 1), tiled_e),     # tgt index column
                pl.BlockSpec((1, TE), tiled_row),   # tgt index row (scatter)
                pl.BlockSpec((TE, R), tiled_e),     # relation tile
                pl.BlockSpec((N_pad, DV), const),   # P_src (resident)
                pl.BlockSpec((N_pad, DV), const),   # P_tgt (resident)
                pl.BlockSpec((R, DV), const),       # W1 rel block
                pl.BlockSpec((DV, H), const),       # weight2 folded block-sum
                pl.BlockSpec((H, DV), const),       # head broadcast matrix
            ],
            out_specs=[
                pl.BlockSpec((N_pad, DV), const),   # node output (resident acc)
                pl.BlockSpec((TE, H), attn_map),    # attention (phase-1 only)
            ],
            scratch_shapes=[
                pltpu.VMEM((N_pad, H), f32),        # neighborhood exp sums
                pltpu.VMEM((1, 1), f32),            # running global score max
            ]),
        compiler_params=pltpu.CompilerParams(
            dimension_semantics=("arbitrary", "arbitrary"),
            vmem_limit_bytes=48 * 1024 * 1024),
    )(src_col, tgt_col, tgt_row, rel_p, p_src, p_tgt, w1r_t, w2seg, segT)

    # self projection + bias and the relation output are independent of the hot
    # path: hoisted to plain XLA.
    out = out_pad[:N] + inp @ params["self_weight"].T + params["final_bias"]
    attn = attn_pad[:E]
    rel_out = relation_inp @ params["rel_weight"].T
    attn_per_head = [attn[:, h] for h in range(H)]
    return out, attn_per_head, rel_out


def kbgat_reference(inp, relation_inp, edge_index, params, num_heads, d_v):
    """Pure-JAX reference mirroring the PyTorch forward for validation."""
    N, D = inp.shape
    src_index, tgt_index = edge_index[0], edge_index[1]
    node_src = inp[src_index]
    node_tgt = inp[tgt_index]
    src_tgt_rel = jnp.concatenate([node_src, node_tgt, relation_inp], -1)
    nsf = src_tgt_rel @ params["weight1"].T                         # (E, H*d_v)
    nsf3 = nsf.reshape(-1, num_heads, d_v)
    scores = jnp.einsum("eij,ijk->eik", nsf3, params["weight2"])[..., 0]
    scores = jnp.where(scores > 0, scores, 0.2 * scores)
    scores = scores - scores.max()
    exp_scores = jnp.exp(scores)
    neighbor_sum = jax.ops.segment_sum(exp_scores, tgt_index, num_segments=N)
    attn = exp_scores / (neighbor_sum[tgt_index] + EPS)
    weighted = nsf3 * attn[..., None]
    out = jax.ops.segment_sum(weighted, tgt_index, num_segments=N).reshape(N, -1)
    out = out + inp @ params["self_weight"].T + params["final_bias"]
    rel_out = relation_inp @ params["rel_weight"].T
    return out, [attn[:, h] for h in range(num_heads)], rel_out


if __name__ == "__main__":
    # Small deterministic config; edge_tile=128 with E=300 exercises multiple
    # edge tiles plus a partial (masked) last tile (128, 128, 44+pad).
    N, E = 12, 300
    model_dim, num_heads = 32, 4
    d_v = model_dim // num_heads                       # concat=True
    deprel_edge_dim, deparc_edge_dim = 8, 8
    relation_dim = deprel_edge_dim + deparc_edge_dim   # use_deprel=True

    key = jax.random.PRNGKey(0)
    ks = jax.random.split(key, 8)

    inp = jax.random.normal(ks[0], (N, model_dim), jnp.float32)
    relation_inp = jax.random.normal(ks[1], (E, relation_dim), jnp.float32)
    src_index = jax.random.randint(ks[2], (E,), 0, N)
    tgt_index = jax.random.randint(ks[3], (E,), 0, N)
    edge_index = jnp.stack([src_index, tgt_index], axis=0)

    def xavier(k, shape):
        fan_in = shape[-1]
        fan_out = shape[-2] if len(shape) > 1 else shape[-1]
        limit = (6.0 / (fan_in + fan_out)) ** 0.5
        return jax.random.uniform(k, shape, jnp.float32, -limit, limit)

    params = {
        # nn.Linear(2D+R, H*d_v, bias=False): weight (H*d_v, 2D+R)
        "weight1": xavier(ks[4], (num_heads * d_v, 2 * model_dim + relation_dim)),
        # nn.Parameter (H, d_v, 1)
        "weight2": xavier(ks[5], (num_heads, d_v, 1)),
        # nn.Linear(D, D, bias=False)
        "self_weight": xavier(ks[6], (model_dim, model_dim)),
        # final bias initialized to zeros in the module
        "final_bias": jnp.zeros((model_dim,), jnp.float32),
        # nn.Linear(R, R, bias=False)
        "rel_weight": xavier(ks[7], (relation_dim, relation_dim)),
    }

    out, attn_per_head, rel_out = kbgat_forward(
        inp, relation_inp, edge_index, params, num_heads, d_v, edge_tile=128)
    jax.block_until_ready(out)
    jax.block_until_ready(rel_out)

    ref_out, ref_attn, ref_rel = kbgat_reference(
        inp, relation_inp, edge_index, params, num_heads, d_v)

    assert jnp.allclose(out, ref_out, atol=2e-2, rtol=2e-2), \
        float(jnp.max(jnp.abs(out - ref_out)))
    assert jnp.allclose(rel_out, ref_rel, atol=2e-2, rtol=2e-2)
    for a, b in zip(attn_per_head, ref_attn):
        assert jnp.allclose(a, b, atol=2e-2, rtol=2e-2)

    print("KERNEL_OK")
</pallas_src>

<mosaic_0001>
module attributes {stable_mosaic.version = 11 : i64} {
  func.func @kernel(%arg0: i32, %arg1: i32, %arg2: memref<128x1xi32, #tpu.memory_space<vmem>>, %arg3: memref<128x1xi32, #tpu.memory_space<vmem>>, %arg4: memref<1x128xi32, #tpu.memory_space<vmem>>, %arg5: memref<128x16xf32, #tpu.memory_space<vmem>>, %arg6: memref<16x32xf32, #tpu.memory_space<vmem>>, %arg7: memref<16x32xf32, #tpu.memory_space<vmem>>, %arg8: memref<16x32xf32, #tpu.memory_space<vmem>>, %arg9: memref<32x4xf32, #tpu.memory_space<vmem>>, %arg10: memref<4x32xf32, #tpu.memory_space<vmem>>, %arg11: memref<16x32xf32, #tpu.memory_space<vmem>>, %arg12: memref<128x4xf32, #tpu.memory_space<vmem>>, %arg13: memref<16x4xf32, #tpu.memory_space<vmem>>, %arg14: memref<1x1xf32, #tpu.memory_space<vmem>>) attributes {dimension_semantics = [#tpu.dimension_semantics<arbitrary>, #tpu.dimension_semantics<arbitrary>], iteration_bounds = array<i64: 2, 3>, scalar_prefetch = 0 : i64, scratch_operands = 2 : i64, tpu.core_type = #tpu.core_type<tc>, window_params = [{transform_indices = @transform_0, window_bounds = array<i64: 128, 1>}, {transform_indices = @transform_1, window_bounds = array<i64: 128, 1>}, {transform_indices = @transform_2, window_bounds = array<i64: 1, 128>}, {transform_indices = @transform_3, window_bounds = array<i64: 128, 16>}, {pipeline_mode = #tpu.pipeline_mode<synchronous>, transform_indices = @transform_4, window_bounds = array<i64: 16, 32>}, {pipeline_mode = #tpu.pipeline_mode<synchronous>, transform_indices = @transform_5, window_bounds = array<i64: 16, 32>}, {pipeline_mode = #tpu.pipeline_mode<synchronous>, transform_indices = @transform_6, window_bounds = array<i64: 16, 32>}, {pipeline_mode = #tpu.pipeline_mode<synchronous>, transform_indices = @transform_7, window_bounds = array<i64: 32, 4>}, {pipeline_mode = #tpu.pipeline_mode<synchronous>, transform_indices = @transform_8, window_bounds = array<i64: 4, 32>}, {pipeline_mode = #tpu.pipeline_mode<synchronous>, transform_indices = @transform_9, window_bounds = array<i64: 16, 32>}, {transform_indices = @transform_10, window_bounds = array<i64: 128, 4>}]} {
    %c0 = arith.constant 0 : index
    %c0_0 = arith.constant 0 : index
    %0 = vector.load %arg2[%c0, %c0_0] : memref<128x1xi32, #tpu.memory_space<vmem>>, vector<128x1xi32>
    %c0_1 = arith.constant 0 : index
    %c0_2 = arith.constant 0 : index
    %1 = vector.load %arg3[%c0_1, %c0_2] : memref<128x1xi32, #tpu.memory_space<vmem>>, vector<128x1xi32>
    %c0_3 = arith.constant 0 : index
    %c0_4 = arith.constant 0 : index
    %2 = vector.load %arg4[%c0_3, %c0_4] : memref<1x128xi32, #tpu.memory_space<vmem>>, vector<1x128xi32>
    %3 = tpu.iota {dimensions = array<i32: 1>} : vector<128x16xi32>
    %4 = vector.broadcast %0 : vector<128x1xi32> to vector<128x16xi32>
    %5 = arith.cmpi eq, %3, %4 : vector<128x16xi32>
    %6 = arith.extui %5 : vector<128x16xi1> to vector<128x16xi32>
    %7 = arith.sitofp %6 : vector<128x16xi32> to vector<128x16xf32>
    %8 = vector.broadcast %1 : vector<128x1xi32> to vector<128x16xi32>
    %9 = arith.cmpi eq, %3, %8 : vector<128x16xi32>
    %10 = arith.extui %9 : vector<128x16xi1> to vector<128x16xi32>
    %11 = arith.sitofp %10 : vector<128x16xi32> to vector<128x16xf32>
    %12 = tpu.iota {dimensions = array<i32: 0>} : vector<16x128xi32>
    %13 = vector.broadcast %2 : vector<1x128xi32> to vector<16x128xi32>
    %14 = arith.cmpi eq, %12, %13 : vector<16x128xi32>
    %15 = arith.extui %14 : vector<16x128xi1> to vector<16x128xi32>
    %16 = arith.sitofp %15 : vector<16x128xi32> to vector<16x128xf32>
    %c0_5 = arith.constant 0 : index
    %c0_6 = arith.constant 0 : index
    %17 = vector.load %arg6[%c0_5, %c0_6] : memref<16x32xf32, #tpu.memory_space<vmem>>, vector<16x32xf32>
    %cst = arith.constant dense<0.000000e+00> : vector<128x32xf32>
    %18 = tpu.matmul %7, %17, %cst {dimension_numbers = #tpu.dot_dimension_numbers<[1], [0], [0], [1], [0, 0, 1, 1], [], []>} : vector<128x16xf32>, vector<16x32xf32>, vector<128x32xf32> -> vector<128x32xf32>
    %c0_7 = arith.constant 0 : index
    %c0_8 = arith.constant 0 : index
    %19 = vector.load %arg7[%c0_7, %c0_8] : memref<16x32xf32, #tpu.memory_space<vmem>>, vector<16x32xf32>
    %cst_9 = arith.constant dense<0.000000e+00> : vector<128x32xf32>
    %20 = tpu.matmul %11, %19, %cst_9 {dimension_numbers = #tpu.dot_dimension_numbers<[1], [0], [0], [1], [0, 0, 1, 1], [], []>} : vector<128x16xf32>, vector<16x32xf32>, vector<128x32xf32> -> vector<128x32xf32>
    %c0_10 = arith.constant 0 : index
    %c0_11 = arith.constant 0 : index
    %21 = vector.load %arg5[%c0_10, %c0_11] : memref<128x16xf32, #tpu.memory_space<vmem>>, vector<128x16xf32>
    %c0_12 = arith.constant 0 : index
    %c0_13 = arith.constant 0 : index
    %22 = vector.load %arg8[%c0_12, %c0_13] : memref<16x32xf32, #tpu.memory_space<vmem>>, vector<16x32xf32>
    %cst_14 = arith.constant dense<0.000000e+00> : vector<128x32xf32>
    %23 = tpu.matmul %21, %22, %cst_14 {dimension_numbers = #tpu.dot_dimension_numbers<[1], [0], [0], [1], [0, 0, 1, 1], [], []>} : vector<128x16xf32>, vector<16x32xf32>, vector<128x32xf32> -> vector<128x32xf32>
    %24 = arith.addf %18, %20 : vector<128x32xf32>
    %25 = arith.addf %24, %23 : vector<128x32xf32>
    %c0_15 = arith.constant 0 : index
    %c0_16 = arith.constant 0 : index
    %26 = vector.load %arg9[%c0_15, %c0_16] : memref<32x4xf32, #tpu.memory_space<vmem>>, vector<32x4xf32>
    %cst_17 = arith.constant dense<0.000000e+00> : vector<128x4xf32>
    %27 = tpu.matmul %25, %26, %cst_17 {dimension_numbers = #tpu.dot_dimension_numbers<[1], [0], [0], [1], [0, 0, 1, 1], [], []>} : vector<128x32xf32>, vector<32x4xf32>, vector<128x4xf32> -> vector<128x4xf32>
    %cst_18 = arith.constant 0.000000e+00 : f32
    %28 = vector.broadcast %cst_18 : f32 to vector<128x4xf32>
    %29 = arith.cmpf ogt, %27, %28 : vector<128x4xf32>
    %cst_19 = arith.constant 2.000000e-01 : f32
    %30 = vector.broadcast %cst_19 : f32 to vector<128x4xf32>
    %31 = arith.mulf %30, %27 : vector<128x4xf32>
    %32 = arith.select %29, %27, %31 : vector<128x4xi1>, vector<128x4xf32>
    %33 = tpu.iota {dimensions = array<i32: 0>} : vector<128x4xi32>
    %c128_i32 = arith.constant 128 : i32
    %34 = arith.muli %arg1, %c128_i32 : i32
    %35 = vector.broadcast %34 : i32 to vector<128x4xi32>
    %36 = arith.addi %33, %35 : vector<128x4xi32>
    %c300_i32 = arith.constant 300 : i32
    %37 = vector.broadcast %c300_i32 : i32 to vector<128x4xi32>
    %38 = arith.cmpi slt, %36, %37 : vector<128x4xi32>
    %cst_20 = arith.constant -1.000000e+30 : f32
    %39 = vector.broadcast %cst_20 : f32 to vector<128x4xf32>
    %40 = arith.select %38, %32, %39 : vector<128x4xi1>, vector<128x4xf32>
    %c0_i32 = arith.constant 0 : i32
    %41 = arith.cmpi eq, %arg0, %c0_i32 : i32
    %c0_i32_21 = arith.constant 0 : i32
    %42 = arith.cmpi eq, %arg1, %c0_i32_21 : i32
    %43 = arith.andi %41, %42 : i1
    %44 = arith.extui %43 : i1 to i32
    %c0_i32_22 = arith.constant 0 : i32
    %45 = arith.cmpi ne, %44, %c0_i32_22 : i32
    scf.if %45 {
      %cst_29 = arith.constant 0.000000e+00 : f32
      %57 = vector.broadcast %cst_29 : f32 to vector<16x4xf32>
      %c0_30 = arith.constant 0 : index
      %c0_31 = arith.constant 0 : index
      %58 = vector.load %arg13[%c0_30, %c0_31] : memref<16x4xf32, #tpu.memory_space<vmem>>, vector<16x4xf32>
      tpu.vector_store %arg13[%c0_30, %c0_31], %57 {strides = array<i32>} : memref<16x4xf32, #tpu.memory_space<vmem>>, vector<16x4xf32>,
      %cst_32 = arith.constant -1.000000e+30 : f32
      %59 = vector.broadcast %cst_32 : f32 to vector<1x1xf32>
      %c0_33 = arith.constant 0 : index
      %c0_34 = arith.constant 0 : index
      %60 = vector.load %arg14[%c0_33, %c0_34] : memref<1x1xf32, #tpu.memory_space<vmem>>, vector<1x1xf32>
      tpu.vector_store %arg14[%c0_33, %c0_34], %59 {strides = array<i32>} : memref<1x1xf32, #tpu.memory_space<vmem>>, vector<1x1xf32>,
    } else {
    }
    %c0_i32_23 = arith.constant 0 : i32
    %46 = arith.cmpi eq, %arg0, %c0_i32_23 : i32
    %47 = arith.extui %46 : i1 to i32
    %c0_i32_24 = arith.constant 0 : i32
    %48 = arith.cmpi ne, %47, %c0_i32_24 : i32
    scf.if %48 {
      %c0_29 = arith.constant 0 : index
      %c0_30 = arith.constant 0 : index
      %57 = vector.load %arg14[%c0_29, %c0_30] : memref<1x1xf32, #tpu.memory_space<vmem>>, vector<1x1xf32>
      %58 = vector.shape_cast %40 : vector<128x4xf32> to vector<1x128x4xf32>
      %cst_31 = arith.constant dense<0xFF800000> : vector<1xf32>
      %59 = vector.multi_reduction <maximumf>, %58, %cst_31 [1, 2] : vector<1x128x4xf32> to vector<1xf32>
      %60 = vector.shape_cast %59 : vector<1xf32> to vector<1x1x1xf32>
      %61 = vector.extract %60[0, 0, 0] : f32 from vector<1x1x1xf32>
      %62 = vector.broadcast %61 : f32 to vector<1x1xf32>
      %63 = arith.maximumf %57, %62 : vector<1x1xf32>
      %64 = vector.broadcast %63 : vector<1x1xf32> to vector<128x4xf32>
      %65 = arith.subf %40, %64 : vector<128x4xf32>
      %66 = math.exp %65 : vector<128x4xf32>
      %67 = arith.subf %57, %63 : vector<1x1xf32>
      %68 = math.exp %67 : vector<1x1xf32>
      %c0_32 = arith.constant 0 : index
      %c0_33 = arith.constant 0 : index
      %69 = vector.load %arg13[%c0_32, %c0_33] : memref<16x4xf32, #tpu.memory_space<vmem>>, vector<16x4xf32>
      %70 = vector.broadcast %68 : vector<1x1xf32> to vector<16x4xf32>
      %71 = arith.mulf %70, %69 : vector<16x4xf32>
      %cst_34 = arith.constant dense<0.000000e+00> : vector<16x4xf32>
      %72 = tpu.matmul %16, %66, %cst_34 {dimension_numbers = #tpu.dot_dimension_numbers<[1], [0], [0], [1], [0, 0, 1, 1], [], []>} : vector<16x128xf32>, vector<128x4xf32>, vector<16x4xf32> -> vector<16x4xf32>
      %73 = arith.addf %71, %72 : vector<16x4xf32>
      %c0_35 = arith.constant 0 : index
      %c0_36 = arith.constant 0 : index
      %74 = vector.load %arg13[%c0_35, %c0_36] : memref<16x4xf32, #tpu.memory_space<vmem>>, vector<16x4xf32>
      tpu.vector_store %arg13[%c0_35, %c0_36], %73 {strides = array<i32>} : memref<16x4xf32, #tpu.memory_space<vmem>>, vector<16x4xf32>,
      %c0_37 = arith.constant 0 : index
      %c0_38 = arith.constant 0 : index
      %75 = vector.load %arg14[%c0_37, %c0_38] : memref<1x1xf32, #tpu.memory_space<vmem>>, vector<1x1xf32>
      tpu.vector_store %arg14[%c0_37, %c0_38], %63 {strides = array<i32>} : memref<1x1xf32, #tpu.memory_space<vmem>>, vector<1x1xf32>,
    } else {
    }
    %c1_i32 = arith.constant 1 : i32
    %49 = arith.cmpi eq, %arg0, %c1_i32 : i32
    %c0_i32_25 = arith.constant 0 : i32
    %50 = arith.cmpi eq, %arg1, %c0_i32_25 : i32
    %51 = arith.andi %49, %50 : i1
    %52 = arith.extui %51 : i1 to i32
    %c0_i32_26 = arith.constant 0 : i32
    %53 = arith.cmpi ne, %52, %c0_i32_26 : i32
    scf.if %53 {
      %cst_29 = arith.constant 0.000000e+00 : f32
      %57 = vector.broadcast %cst_29 : f32 to vector<16x32xf32>
      %c0_30 = arith.constant 0 : index
      %c0_31 = arith.constant 0 : index
      %58 = vector.load %arg11[%c0_30, %c0_31] : memref<16x32xf32, #tpu.memory_space<vmem>>, vector<16x32xf32>
      tpu.vector_store %arg11[%c0_30, %c0_31], %57 {strides = array<i32>} : memref<16x32xf32, #tpu.memory_space<vmem>>, vector<16x32xf32>,
    } else {
    }
    %c1_i32_27 = arith.constant 1 : i32
    %54 = arith.cmpi eq, %arg0, %c1_i32_27 : i32
    %55 = arith.extui %54 : i1 to i32
    %c0_i32_28 = arith.constant 0 : i32
    %56 = arith.cmpi ne, %55, %c0_i32_28 : i32
    scf.if %56 {
      %c0_29 = arith.constant 0 : index
      %c0_30 = arith.constant 0 : index
      %57 = vector.load %arg14[%c0_29, %c0_30] : memref<1x1xf32, #tpu.memory_space<vmem>>, vector<1x1xf32>
      %58 = vector.broadcast %57 : vector<1x1xf32> to vector<128x4xf32>
      %59 = arith.subf %40, %58 : vector<128x4xf32>
      %60 = math.exp %59 : vector<128x4xf32>
      %c0_31 = arith.constant 0 : index
      %c0_32 = arith.constant 0 : index
      %61 = vector.load %arg13[%c0_31, %c0_32] : memref<16x4xf32, #tpu.memory_space<vmem>>, vector<16x4xf32>
      %cst_33 = arith.constant dense<0.000000e+00> : vector<128x4xf32>
      %62 = tpu.matmul %11, %61, %cst_33 {dimension_numbers = #tpu.dot_dimension_numbers<[1], [0], [0], [1], [0, 0, 1, 1], [], []>} : vector<128x16xf32>, vector<16x4xf32>, vector<128x4xf32> -> vector<128x4xf32>
      %cst_34 = arith.constant 9.99999996E-13 : f32
      %63 = vector.broadcast %cst_34 : f32 to vector<128x4xf32>
      %64 = arith.addf %62, %63 : vector<128x4xf32>
      %65 = arith.divf %60, %64 : vector<128x4xf32>
      %c0_35 = arith.constant 0 : index
      %c0_36 = arith.constant 0 : index
      %66 = vector.load %arg12[%c0_35, %c0_36] : memref<128x4xf32, #tpu.memory_space<vmem>>, vector<128x4xf32>
      tpu.vector_store %arg12[%c0_35, %c0_36], %65 {strides = array<i32>} : memref<128x4xf32, #tpu.memory_space<vmem>>, vector<128x4xf32>,
      %c0_37 = arith.constant 0 : index
      %c0_38 = arith.constant 0 : index
      %67 = vector.load %arg10[%c0_37, %c0_38] : memref<4x32xf32, #tpu.memory_space<vmem>>, vector<4x32xf32>
      %cst_39 = arith.constant dense<0.000000e+00> : vector<128x32xf32>
      %68 = tpu.matmul %65, %67, %cst_39 {dimension_numbers = #tpu.dot_dimension_numbers<[1], [0], [0], [1], [0, 0, 1, 1], [], []>} : vector<128x4xf32>, vector<4x32xf32>, vector<128x32xf32> -> vector<128x32xf32>
      %69 = arith.mulf %25, %68 : vector<128x32xf32>
      %c0_40 = arith.constant 0 : index
      %c0_41 = arith.constant 0 : index
      %70 = vector.load %arg11[%c0_40, %c0_41] : memref<16x32xf32, #tpu.memory_space<vmem>>, vector<16x32xf32>
      %cst_42 = arith.constant dense<0.000000e+00> : vector<16x32xf32>
      %71 = tpu.matmul %16, %69, %cst_42 {dimension_numbers = #tpu.dot_dimension_numbers<[1], [0], [0], [1], [0, 0, 1, 1], [], []>} : vector<16x128xf32>, vector<128x32xf32>, vector<16x32xf32> -> vector<16x32xf32>
      %72 = arith.addf %70, %71 : vector<16x32xf32>
      %c0_43 = arith.constant 0 : index
      %c0_44 = arith.constant 0 : index
      %73 = vector.load %arg11[%c0_43, %c0_44] : memref<16x32xf32, #tpu.memory_space<vmem>>, vector<16x32xf32>
      tpu.vector_store %arg11[%c0_43, %c0_44], %72 {strides = array<i32>} : memref<16x32xf32, #tpu.memory_space<vmem>>, vector<16x32xf32>,
    } else {
    }
    return
  }
  func.func @transform_0(%arg0: i32, %arg1: i32) -> (i32, i32) {
    %c0_i32 = arith.constant 0 : i32
    %c0_i32_0 = arith.constant 0 : i32
    return %arg1, %c0_i32 : i32, i32
  }
  func.func @transform_1(%arg0: i32, %arg1: i32) -> (i32, i32) {
    %c0_i32 = arith.constant 0 : i32
    %c0_i32_0 = arith.constant 0 : i32
    return %arg1, %c0_i32 : i32, i32
  }
  func.func @transform_2(%arg0: i32, %arg1: i32) -> (i32, i32) {
    %c0_i32 = arith.constant 0 : i32
    %c0_i32_0 = arith.constant 0 : i32
    return %c0_i32, %arg1 : i32, i32
  }
  func.func @transform_3(%arg0: i32, %arg1: i32) -> (i32, i32) {
    %c0_i32 = arith.constant 0 : i32
    %c0_i32_0 = arith.constant 0 : i32
    return %arg1, %c0_i32 : i32, i32
  }
  func.func @transform_4(%arg0: i32, %arg1: i32) -> (i32, i32) {
    %c0_i32 = arith.constant 0 : i32
    %c0_i32_0 = arith.constant 0 : i32
    %c0_i32_1 = arith.constant 0 : i32
    return %c0_i32, %c0_i32_0 : i32, i32
  }
  func.func @transform_5(%arg0: i32, %arg1: i32) -> (i32, i32) {
    %c0_i32 = arith.constant 0 : i32
    %c0_i32_0 = arith.constant 0 : i32
    %c0_i32_1 = arith.constant 0 : i32
    return %c0_i32, %c0_i32_0 : i32, i32
  }
  func.func @transform_6(%arg0: i32, %arg1: i32) -> (i32, i32) {
    %c0_i32 = arith.constant 0 : i32
    %c0_i32_0 = arith.constant 0 : i32
    %c0_i32_1 = arith.constant 0 : i32
    return %c0_i32, %c0_i32_0 : i32, i32
  }
  func.func @transform_7(%arg0: i32, %arg1: i32) -> (i32, i32) {
    %c0_i32 = arith.constant 0 : i32
    %c0_i32_0 = arith.constant 0 : i32
    %c0_i32_1 = arith.constant 0 : i32
    return %c0_i32, %c0_i32_0 : i32, i32
  }
  func.func @transform_8(%arg0: i32, %arg1: i32) -> (i32, i32) {
    %c0_i32 = arith.constant 0 : i32
    %c0_i32_0 = arith.constant 0 : i32
    %c0_i32_1 = arith.constant 0 : i32
    return %c0_i32, %c0_i32_0 : i32, i32
  }
  func.func @transform_9(%arg0: i32, %arg1: i32) -> (i32, i32) {
    %c0_i32 = arith.constant 0 : i32
    %c0_i32_0 = arith.constant 0 : i32
    %c0_i32_1 = arith.constant 0 : i32
    return %c0_i32, %c0_i32_0 : i32, i32
  }
  func.func @transform_10(%arg0: i32, %arg1: i32) -> (i32, i32) {
    %0 = arith.muli %arg1, %arg0 : i32
    %c0_i32 = arith.constant 0 : i32
    %c0_i32_0 = arith.constant 0 : i32
    return %0, %c0_i32 : i32, i32
  }
}

</mosaic_0001>

<llo_original>
// kernel: tpu_custom_call.1
$region0: #{tpu_custom_call.1}
  #allocation0 [shape = 'u32[]', space=smem, size = 0x4, offset = 0x4, fixed_abs, tag = 'smem constant byte address 0x4 - core index']
  #allocation1 [shape = 'u32[144,128]{1,0:T(1,128)}', space=vmem, size = 0x12000, scoped, tag = 'internal scratch']
  #allocation2 [shape = 'f32[16,4]{1,0:T(8,128)}', space=vmem, size = 0x2000, scoped, tag = 'scratch operand']
  #allocation3 [shape = 'f32[1,1]{1,0:T(1,128)}', space=vmem, size = 0x200, scoped, tag = 'scratch operand']
  %s0 = inlined_call_operand.vmem [shape: s32[384,1], index: 0, kind: input, shape index: {}]
  %s1 = inlined_call_operand.vmem [shape: s32[384,1], index: 1, kind: input, shape index: {}]
  %s2 = inlined_call_operand.vmem [shape: s32[1,384], index: 2, kind: input, shape index: {}]
  %s3 = inlined_call_operand.vmem [shape: f32[384,16], index: 3, kind: input, shape index: {}]
  %s4 = inlined_call_operand.vmem [shape: f32[16,32], index: 4, kind: input, shape index: {}]
  %s5 = inlined_call_operand.vmem [shape: f32[16,32], index: 5, kind: input, shape index: {}]
  %s6 = inlined_call_operand.vmem [shape: f32[16,32], index: 6, kind: input, shape index: {}]
  %s7 = inlined_call_operand.vmem [shape: f32[32,4], index: 7, kind: input, shape index: {}]
  %s8 = inlined_call_operand.vmem [shape: f32[4,32], index: 8, kind: input, shape index: {}]
  %s9 = inlined_call_operand.hbm [shape: f32[16,32], index: 9, kind: output, shape index: {0}]
  %s10 = inlined_call_operand.vmem [shape: f32[384,4], index: 10, kind: output, shape index: {1}]
  %11 = xla_tuple %s9, %s10
  %s12 = sld [smem:[#allocation0]]
  $region93: #{tpu_custom_call.1} parent=0
    _
  %s14 = ssub.s32 1, %s12
  %s15 = scalar_select 0, %s14, %s12
  $region1: #{tpu_custom_call.1} parent=0
    #allocation4 [shape = 'u8[8192]{0}', space=vmem, size = 0x2000, scoped, tag = 'output window, operand 0, single buffered']
    #allocation5 [shape = 's32[2]{0}', space=sflag, size = 0x8, scoped, tag = 'scoped memory for tpu_custom_call.1']
    %16 = vsyncpa [#allocation5], 0
    loop: start=0, step=1, limit=8
    $region2: #{tpu_custom_call.1} parent=1 // loop_pre_header
      _
    $region3: #{tpu_custom_call.1} parent=1 // loop_header
      %s18 = sphi 0, %s22
      %p19 = scmp.ge.s32.totalorder %s18, 8
      %s25 = sphi 0, %s37
      %s26 = sphi 0, %s33
      %s27 = sphi 0, %s25
      %s28 = sphi 0, %s26
      %s29 = sphi 0, %s27
      %s30 = sphi 0, %s28
      %s40 = sphi 0, %s42
      %s43 = sphi 0, %s40
      %s44 = sphi 0, %s43
      %s60 = sphi 0, %s44
      %s66 = sphi 0, %s68
      %s69 = sphi 0, %s66
      %s70 = sphi 0, %s69
      %s86 = sphi 0, %s70
      %s92 = sphi 0, %s94
      %s95 = sphi 0, %s92
      %s96 = sphi 0, %s95
      %s112 = sphi 0, %s96
      %s118 = sphi 0, %s120
      %s121 = sphi 0, %s118
      %s122 = sphi 0, %s121
      %s138 = sphi 0, %s122
      %s142 = sphi 0, %s142
      %s144 = sphi 0, %s142
      %s145 = sphi 0, %s144
      %s159 = sphi 0, %s145
      %s163 = sphi 0, %s163
      %s165 = sphi 0, %s163
      %s166 = sphi 0, %s165
      %s180 = sphi 0, %s166
      %s184 = sphi 0, %s184
      %s186 = sphi 0, %s184
      %s187 = sphi 0, %s186
      %s201 = sphi 0, %s187
      %s205 = sphi 0, %s205
      %s207 = sphi 0, %s205
      %s208 = sphi 0, %s207
      %s222 = sphi 0, %s208
      %s226 = sphi 0, %s226
      %s228 = sphi 0, %s226
      %s229 = sphi 0, %s228
      %s243 = sphi 0, %s229
      %s247 = sphi 0, %s247
      %s249 = sphi 0, %s247
      %s250 = sphi 0, %s249
      %s264 = sphi 0, %s250
      %s272 = sphi 0, %s274
      %s275 = sphi 0, %s272
      %s276 = sphi 0, %s275
      %s292 = sphi 0, %s276
    $region4: #{tpu_custom_call.1} parent=1 // loop_header_branch
      %21 = sbr.rel (%p19) target = $region8
    $region5: #{tpu_custom_call.1} parent=1 // loop_body
      %s23 = ssub.s32 %s18, 1
      %s24 = ssub.s32 %s18, 2
      %s31 = sadd.s32 1, %s26
      %p32 = scmp.ge.s32.totalorder %s31, 3
      %s33 = scalar_select %p32, 0, %s31
      %s34 = sadd.s32 1, %s25
      %s35 = scalar_select %p32, %s34, %s25
      %p36 = scmp.ge.s32.totalorder %s35, 2
      %s37 = scalar_select %p36, 0, %s35
      %s38 = ssub.s32 %s26, %s33
      %p39 = scmp.eq.s32.totalorder %s38, 0
      %s41 = sadd.s32 %s40, 1
      %s42 = scalar_select %p39, %s40, %s41
      %p45 = pneg %p39
      %p46 = scmp.eq.s32.totalorder %s18, 5
      %p47 = por %p45, %p46
      %p48 = scmp.ne.s32.totalorder %s40, %s43
      %p49 = scmp.eq.s32.totalorder %s18, 0
      %p50 = por %p48, %p49
      %p51 = scmp.ne.s32.totalorder %s40, %s43
      %p52 = scmp.eq.s32.totalorder %s23, 5
      %p53 = por %p51, %p52
      %p54 = scmp.ne.s32.totalorder %s43, %s44
      %p55 = scmp.eq.s32.totalorder %s23, 0
      %p56 = por %p54, %p55
      %p57 = scmp.ne.s32.totalorder %s43, %s44
      %p58 = scmp.eq.s32.totalorder %s24, 5
      %p59 = por %p57, %p58
      %p61 = scmp.ne.s32.totalorder %s44, %s60
      %p62 = scmp.eq.s32.totalorder %s24, 0
      %p63 = por %p61, %p62
      %s64 = ssub.s32 %s26, %s33
      %p65 = scmp.eq.s32.totalorder %s64, 0
      %s67 = sadd.s32 %s66, 1
      %s68 = scalar_select %p65, %s66, %s67
      %p71 = pneg %p65
      %p72 = scmp.eq.s32.totalorder %s18, 5
      %p73 = por %p71, %p72
      %p74 = scmp.ne.s32.totalorder %s66, %s69
      %p75 = scmp.eq.s32.totalorder %s18, 0
      %p76 = por %p74, %p75
      %p77 = scmp.ne.s32.totalorder %s66, %s69
      %p78 = scmp.eq.s32.totalorder %s23, 5
      %p79 = por %p77, %p78
      %p80 = scmp.ne.s32.totalorder %s69, %s70
      %p81 = scmp.eq.s32.totalorder %s23, 0
      %p82 = por %p80, %p81
      %p83 = scmp.ne.s32.totalorder %s69, %s70
      %p84 = scmp.eq.s32.totalorder %s24, 5
      %p85 = por %p83, %p84
      %p87 = scmp.ne.s32.totalorder %s70, %s86
      %p88 = scmp.eq.s32.totalorder %s24, 0
      %p89 = por %p87, %p88
      %s90 = ssub.s32 %s26, %s33
      %p91 = scmp.eq.s32.totalorder %s90, 0
      %s93 = sadd.s32 %s92, 1
      %s94 = scalar_select %p91, %s92, %s93
      %p97 = pneg %p91
      %p98 = scmp.eq.s32.totalorder %s18, 5
      %p99 = por %p97, %p98
      %p100 = scmp.ne.s32.totalorder %s92, %s95
      %p101 = scmp.eq.s32.totalorder %s18, 0
      %p102 = por %p100, %p101
      %p103 = scmp.ne.s32.totalorder %s92, %s95
      %p104 = scmp.eq.s32.totalorder %s23, 5
      %p105 = por %p103, %p104
      %p106 = scmp.ne.s32.totalorder %s95, %s96
      %p107 = scmp.eq.s32.totalorder %s23, 0
      %p108 = por %p106, %p107
      %p109 = scmp.ne.s32.totalorder %s95, %s96
      %p110 = scmp.eq.s32.totalorder %s24, 5
      %p111 = por %p109, %p110
      %p113 = scmp.ne.s32.totalorder %s96, %s112
      %p114 = scmp.eq.s32.totalorder %s24, 0
      %p115 = por %p113, %p114
      %s116 = ssub.s32 %s26, %s33
      %p117 = scmp.eq.s32.totalorder %s116, 0
      %s119 = sadd.s32 %s118, 1
      %s120 = scalar_select %p117, %s118, %s119
      %p123 = pneg %p117
      %p124 = scmp.eq.s32.totalorder %s18, 5
      %p125 = por %p123, %p124
      %p126 = scmp.ne.s32.totalorder %s118, %s121
      %p127 = scmp.eq.s32.totalorder %s18, 0
      %p128 = por %p126, %p127
      %p129 = scmp.ne.s32.totalorder %s118, %s121
      %p130 = scmp.eq.s32.totalorder %s23, 5
      %p131 = por %p129, %p130
      %p132 = scmp.ne.s32.totalorder %s121, %s122
      %p133 = scmp.eq.s32.totalorder %s23, 0
      %p134 = por %p132, %p133
      %p135 = scmp.ne.s32.totalorder %s121, %s122
      %p136 = scmp.eq.s32.totalorder %s24, 5
      %p137 = por %p135, %p136
      %p139 = scmp.ne.s32.totalorder %s122, %s138
      %p140 = scmp.eq.s32.totalorder %s24, 0
      %p141 = por %p139, %p140
      %s143 = sadd.s32 %s142, 1
      %p146 = scmp.eq.s32.totalorder %s18, 5
      %p147 = scmp.ne.s32.totalorder %s142, %s144
      %p148 = scmp.eq.s32.totalorder %s18, 0
      %p149 = por %p147, %p148
      %p150 = scmp.ne.s32.totalorder %s142, %s144
      %p151 = scmp.eq.s32.totalorder %s23, 5
      %p152 = por %p150, %p151
      %p153 = scmp.ne.s32.totalorder %s144, %s145
      %p154 = scmp.eq.s32.totalorder %s23, 0
      %p155 = por %p153, %p154
      %p156 = scmp.ne.s32.totalorder %s144, %s145
      %p157 = scmp.eq.s32.totalorder %s24, 5
      %p158 = por %p156, %p157
      %p160 = scmp.ne.s32.totalorder %s145, %s159
      %p161 = scmp.eq.s32.totalorder %s24, 0
      %p162 = por %p160, %p161
      %s164 = sadd.s32 %s163, 1
      %p167 = scmp.eq.s32.totalorder %s18, 5
      %p168 = scmp.ne.s32.totalorder %s163, %s165
      %p169 = scmp.eq.s32.totalorder %s18, 0
      %p170 = por %p168, %p169
      %p171 = scmp.ne.s32.totalorder %s163, %s165
      %p172 = scmp.eq.s32.totalorder %s23, 5
      %p173 = por %p171, %p172
      %p174 = scmp.ne.s32.totalorder %s165, %s166
      %p175 = scmp.eq.s32.totalorder %s23, 0
      %p176 = por %p174, %p175
      %p177 = scmp.ne.s32.totalorder %s165, %s166
      %p178 = scmp.eq.s32.totalorder %s24, 5
      %p179 = por %p177, %p178
      %p181 = scmp.ne.s32.totalorder %s166, %s180
      %p182 = scmp.eq.s32.totalorder %s24, 0
      %p183 = por %p181, %p182
      %s185 = sadd.s32 %s184, 1
      %p188 = scmp.eq.s32.totalorder %s18, 5
      %p189 = scmp.ne.s32.totalorder %s184, %s186
      %p190 = scmp.eq.s32.totalorder %s18, 0
      %p191 = por %p189, %p190
      %p192 = scmp.ne.s32.totalorder %s184, %s186
      %p193 = scmp.eq.s32.totalorder %s23, 5
      %p194 = por %p192, %p193
      %p195 = scmp.ne.s32.totalorder %s186, %s187
      %p196 = scmp.eq.s32.totalorder %s23, 0
      %p197 = por %p195, %p196
      %p198 = scmp.ne.s32.totalorder %s186, %s187
      %p199 = scmp.eq.s32.totalorder %s24, 5
      %p200 = por %p198, %p199
      %p202 = scmp.ne.s32.totalorder %s187, %s201
      %p203 = scmp.eq.s32.totalorder %s24, 0
      %p204 = por %p202, %p203
      %s206 = sadd.s32 %s205, 1
      %p209 = scmp.eq.s32.totalorder %s18, 5
      %p210 = scmp.ne.s32.totalorder %s205, %s207
      %p211 = scmp.eq.s32.totalorder %s18, 0
      %p212 = por %p210, %p211
      %p213 = scmp.ne.s32.totalorder %s205, %s207
      %p214 = scmp.eq.s32.totalorder %s23, 5
      %p215 = por %p213, %p214
      %p216 = scmp.ne.s32.totalorder %s207, %s208
      %p217 = scmp.eq.s32.totalorder %s23, 0
      %p218 = por %p216, %p217
      %p219 = scmp.ne.s32.totalorder %s207, %s208
      %p220 = scmp.eq.s32.totalorder %s24, 5
      %p221 = por %p219, %p220
      %p223 = scmp.ne.s32.totalorder %s208, %s222
      %p224 = scmp.eq.s32.totalorder %s24, 0
      %p225 = por %p223, %p224
      %s227 = sadd.s32 %s226, 1
      %p230 = scmp.eq.s32.totalorder %s18, 5
      %p231 = scmp.ne.s32.totalorder %s226, %s228
      %p232 = scmp.eq.s32.totalorder %s18, 0
      %p233 = por %p231, %p232
      %p234 = scmp.ne.s32.totalorder %s226, %s228
      %p235 = scmp.eq.s32.totalorder %s23, 5
      %p236 = por %p234, %p235
      %p237 = scmp.ne.s32.totalorder %s228, %s229
      %p238 = scmp.eq.s32.totalorder %s23, 0
      %p239 = por %p237, %p238
      %p240 = scmp.ne.s32.totalorder %s228, %s229
      %p241 = scmp.eq.s32.totalorder %s24, 5
      %p242 = por %p240, %p241
      %p244 = scmp.ne.s32.totalorder %s229, %s243
      %p245 = scmp.eq.s32.totalorder %s24, 0
      %p246 = por %p244, %p245
      %s248 = sadd.s32 %s247, 1
      %p251 = scmp.eq.s32.totalorder %s18, 5
      %p252 = scmp.ne.s32.totalorder %s247, %s249
      %p253 = scmp.eq.s32.totalorder %s18, 0
      %p254 = por %p252, %p253
      %p255 = scmp.ne.s32.totalorder %s247, %s249
      %p256 = scmp.eq.s32.totalorder %s23, 5
      %p257 = por %p255, %p256
      %p258 = scmp.ne.s32.totalorder %s249, %s250
      %p259 = scmp.eq.s32.totalorder %s23, 0
      %p260 = por %p258, %p259
      %p261 = scmp.ne.s32.totalorder %s249, %s250
      %p262 = scmp.eq.s32.totalorder %s24, 5
      %p263 = por %p261, %p262
      %p265 = scmp.ne.s32.totalorder %s250, %s264
      %p266 = scmp.eq.s32.totalorder %s24, 0
      %p267 = por %p265, %p266
      %s268 = smul.u32 %s26, %s25
      %s269 = smul.u32 %s33, %s37
      %s270 = ssub.s32 %s268, %s269
      %p271 = scmp.eq.s32.totalorder %s270, 0
      %s273 = sadd.s32 %s272, 1
      %s274 = scalar_select %p271, %s272, %s273
      %p277 = pneg %p271
      %p278 = scmp.eq.s32.totalorder %s18, 5
      %p279 = por %p277, %p278
      %p280 = scmp.ne.s32.totalorder %s272, %s275
      %p281 = scmp.eq.s32.totalorder %s18, 0
      %p282 = por %p280, %p281
      %p283 = scmp.ne.s32.totalorder %s272, %s275
      %p284 = scmp.eq.s32.totalorder %s23, 5
      %p285 = por %p283, %p284
      %p286 = scmp.ne.s32.totalorder %s275, %s276
      %p287 = scmp.eq.s32.totalorder %s23, 0
      %p288 = por %p286, %p287
      %p289 = scmp.ne.s32.totalorder %s275, %s276
      %p290 = scmp.eq.s32.totalorder %s24, 5
      %p291 = por %p289, %p290
      %p293 = scmp.ne.s32.totalorder %s276, %s292
      %p294 = scmp.eq.s32.totalorder %s24, 0
      %p295 = por %p293, %p294
      %p296 = scmp.le.s32.totalorder 1, %s18
      %p297 = scmp.lt.s32.totalorder %s18, 7
      %p298 = pnand %p296, %p297
      %p299 = pneg %p298
      // Predicated region
      $region9: #{tpu_custom_call.1} parent=5 // pred_check
        _
      $region10: #{tpu_custom_call.1} parent=5 // pred_check_branch
        %301 = sbr.rel (%p298) target = $region12
      $region11: #{tpu_custom_call.1} parent=5 // pred_region
        %s302 = ssub.s32 %s18, 1
        // Predicated region
        $region13: #{tpu_custom_call.1} parent=11 // pred_check
          %p303 = pneg %p155
        $region14: #{tpu_custom_call.1} parent=11 // pred_check_branch
          %305 = sbr.rel (%p303) target = $region16
        $region15: #{tpu_custom_call.1} parent=11 // pred_region
          _
        $region16: #{tpu_custom_call.1} parent=11 // pred_fallthru
          _
        // Predicated region
        $region17: #{tpu_custom_call.1} parent=11 // pred_check
          %p306 = pneg %p176
        $region18: #{tpu_custom_call.1} parent=11 // pred_check_branch
          %308 = sbr.rel (%p306) target = $region20
        $region19: #{tpu_custom_call.1} parent=11 // pred_region
          _
        $region20: #{tpu_custom_call.1} parent=11 // pred_fallthru
          _
        // Predicated region
        $region21: #{tpu_custom_call.1} parent=11 // pred_check
          %p309 = pneg %p197
        $region22: #{tpu_custom_call.1} parent=11 // pred_check_branch
          %311 = sbr.rel (%p309) target = $region24
        $region23: #{tpu_custom_call.1} parent=11 // pred_region
          _
        $region24: #{tpu_custom_call.1} parent=11 // pred_fallthru
          _
        // Predicated region
        $region25: #{tpu_custom_call.1} parent=11 // pred_check
          %p312 = pneg %p218
        $region26: #{tpu_custom_call.1} parent=11 // pred_check_branch
          %314 = sbr.rel (%p312) target = $region28
        $region27: #{tpu_custom_call.1} parent=11 // pred_region
          _
        $region28: #{tpu_custom_call.1} parent=11 // pred_fallthru
          _
        // Predicated region
        $region29: #{tpu_custom_call.1} parent=11 // pred_check
          %p315 = pneg %p239
        $region30: #{tpu_custom_call.1} parent=11 // pred_check_branch
          %317 = sbr.rel (%p315) target = $region32
        $region31: #{tpu_custom_call.1} parent=11 // pred_region
          _
        $region32: #{tpu_custom_call.1} parent=11 // pred_fallthru
          _
      $region12: #{tpu_custom_call.1} parent=5 // pred_fallthru
        _
      %p318 = scmp.lt.s32.totalorder %s18, 6
      // Predicated region
      $region33: #{tpu_custom_call.1} parent=5 // pred_check
        %p319 = pneg %p318
      $region34: #{tpu_custom_call.1} parent=5 // pred_check_branch
        %321 = sbr.rel (%p319) target = $region36
      $region35: #{tpu_custom_call.1} parent=5 // pred_region
        // Predicated region
        $region37: #{tpu_custom_call.1} parent=35 // pred_check
          %p322 = pneg %p50
        $region38: #{tpu_custom_call.1} parent=35 // pred_check_branch
          %324 = sbr.rel (%p322) target = $region40
        $region39: #{tpu_custom_call.1} parent=35 // pred_region
          %s325 = smul.u32 16, %s26
          %p326 = scmp.lt.s32.totalorder %s325, 47
          %s327 = scalar_select %p326, %s325, 47
          %s328 = smul.addr %s327, 8
          %s329 = scalar_lea.vmem %s0, %s328
          %s330 = smul.u32 16, %s26
        $region40: #{tpu_custom_call.1} parent=35 // pred_fallthru
          _
        // Predicated region
        $region41: #{tpu_custom_call.1} parent=35 // pred_check
          %p331 = pneg %p76
        $region42: #{tpu_custom_call.1} parent=35 // pred_check_branch
          %333 = sbr.rel (%p331) target = $region44
        $region43: #{tpu_custom_call.1} parent=35 // pred_region
          %s334 = smul.u32 16, %s26
          %p335 = scmp.lt.s32.totalorder %s334, 47
          %s336 = scalar_select %p335, %s334, 47
          %s337 = smul.addr %s336, 8
          %s338 = scalar_lea.vmem %s1, %s337
          %s339 = smul.u32 16, %s26
        $region44: #{tpu_custom_call.1} parent=35 // pred_fallthru
          _
        // Predicated region
        $region45: #{tpu_custom_call.1} parent=35 // pred_check
          %p340 = pneg %p102
        $region46: #{tpu_custom_call.1} parent=35 // pred_check_branch
          %342 = sbr.rel (%p340) target = $region48
        $region47: #{tpu_custom_call.1} parent=35 // pred_region
          %p343 = scmp.lt.s32.totalorder %s26, 2
          %s344 = scalar_select %p343, %s26, 2
          %s345 = scalar_lea.vmem %s2, %s344
        $region48: #{tpu_custom_call.1} parent=35 // pred_fallthru
          _
        // Predicated region
        $region49: #{tpu_custom_call.1} parent=35 // pred_check
          %p346 = pneg %p128
        $region50: #{tpu_custom_call.1} parent=35 // pred_check_branch
          %348 = sbr.rel (%p346) target = $region52
        $region51: #{tpu_custom_call.1} parent=35 // pred_region
          %s349 = smul.u32 16, %s26
          %p350 = scmp.lt.s32.totalorder %s349, 47
          %s351 = scalar_select %p350, %s349, 47
          %s352 = smul.addr %s351, 8
          %s353 = scalar_lea.vmem %s3, %s352
          %s354 = smul.u32 16, %s26
        $region52: #{tpu_custom_call.1} parent=35 // pred_fallthru
          _
      $region36: #{tpu_custom_call.1} parent=5 // pred_fallthru
        _
      %p355 = scmp.le.s32.totalorder 1, %s18
      %p356 = scmp.lt.s32.totalorder %s18, 7
      %p357 = pnand %p355, %p356
      %p358 = pneg %p357
      // Predicated region
      $region53: #{tpu_custom_call.1} parent=5 // pred_check
        _
      $region54: #{tpu_custom_call.1} parent=5 // pred_check_branch
        %360 = sbr.rel (%p357) target = $region56
      $region55: #{tpu_custom_call.1} parent=5 // pred_region
        %s361 = ssub.s32 %s18, 1
        %s362 = smul.u32 16, %s28
        %p363 = scmp.lt.s32.totalorder %s362, 47
        %s364 = scalar_select %p363, %s362, 47
        %s365 = smul.addr %s364, 8
        %s366 = scalar_lea.vmem %s0, %s365
        %p367 = pneg %p56
        %p368 = pneg %p53
        %s369 = smul.u32 16, %s28
        %p370 = scmp.lt.s32.totalorder %s369, 47
        %s371 = scalar_select %p370, %s369, 47
        %s372 = smul.addr %s371, 8
        %s373 = scalar_lea.vmem %s1, %s372
        %p374 = pneg %p82
        %p375 = pneg %p79
        %p376 = scmp.lt.s32.totalorder %s28, 2
        %s377 = scalar_select %p376, %s28, 2
        %s378 = scalar_lea.vmem %s2, %s377
        %p379 = pneg %p108
        %p380 = pneg %p105
        %s381 = smul.u32 16, %s28
        %p382 = scmp.lt.s32.totalorder %s381, 47
        %s383 = scalar_select %p382, %s381, 47
        %s384 = smul.addr %s383, 8
        %s385 = scalar_lea.vmem %s3, %s384
        %p386 = pneg %p134
        %p387 = pneg %p131
        %p388 = pneg %p155
        %p389 = pneg %p152
        %p390 = pneg %p176
        %p391 = pneg %p173
        %p392 = pneg %p197
        %p393 = pneg %p194
        %p394 = pneg %p218
        %p395 = pneg %p215
        %p396 = pneg %p239
        %p397 = pneg %p236
        %p398 = pneg %p260
        %p399 = pneg %p257
        %p400 = pneg %p288
        %p401 = pneg %p285
        %s402 = smul.u32 %s28, %s27
        %s403 = smul.u32 16, %s402
        %p404 = scmp.lt.s32.totalorder %s403, 47
        %s405 = scalar_select %p404, %s403, 47
        %s406 = smul.addr %s405, 8
        %s407 = scalar_lea.vmem %s10, %s406
        %s408 = smul.u32 16, %s28
        %p409 = scmp.lt.s32.totalorder %s408, 47
        %s410 = scalar_select %p409, %s408, 47
        %s411 = smul.addr %s410, 8
        %s412 = scalar_lea.vmem %s0, %s411
        %s413 = smul.u32 16, %s28
        %s414 = smul.u32 16, %s28
        %p415 = scmp.lt.s32.totalorder %s414, 47
        %s416 = scalar_select %p415, %s414, 47
        %s417 = smul.addr %s416, 8
        %s418 = scalar_lea.vmem %s1, %s417
        %s419 = smul.u32 16, %s28
        %p420 = scmp.lt.s32.totalorder %s28, 2
        %s421 = scalar_select %p420, %s28, 2
        %s422 = scalar_lea.vmem %s2, %s421
        %s423 = smul.u32 16, %s28
        %p424 = scmp.lt.s32.totalorder %s423, 47
        %s425 = scalar_select %p424, %s423, 47
        %s426 = smul.addr %s425, 8
        %s427 = scalar_lea.vmem %s3, %s426
        %s428 = smul.u32 16, %s28
        %s429 = smul.u32 %s28, %s27
        %s430 = smul.u32 16, %s429
        %p431 = scmp.lt.s32.totalorder %s430, 47
        %s432 = scalar_select %p431, %s430, 47
        %s433 = smul.addr %s432, 8
        %s434 = scalar_lea.vmem %s10, %s433
        %s435 = smul.u32 %s28, %s27
        %s436 = smul.u32 16, %s435
        %v437 = vld [vmem:[%s412] sm:$0xff]
        %v438 = vld [vmem:[%s412 + $0x8] sm:$0xff]
        %v439 = vld [vmem:[%s412 + $0x10] sm:$0xff]
        %v440 = vld [vmem:[%s412 + $0x18] sm:$0xff]
        %v441 = vld [vmem:[%s412 + $0x20] sm:$0xff]
        %v442 = vld [vmem:[%s412 + $0x28] sm:$0xff]
        %v443 = vld [vmem:[%s412 + $0x30] sm:$0xff]
        %v444 = vld [vmem:[%s412 + $0x38] sm:$0xff]
        %v445 = vld [vmem:[%s412 + $0x40] sm:$0xff]
        %v446 = vld [vmem:[%s412 + $0x48] sm:$0xff]
        %v447 = vld [vmem:[%s412 + $0x50] sm:$0xff]
        %v448 = vld [vmem:[%s412 + $0x58] sm:$0xff]
        %v449 = vld [vmem:[%s412 + $0x60] sm:$0xff]
        %v450 = vld [vmem:[%s412 + $0x68] sm:$0xff]
        %v451 = vld [vmem:[%s412 + $0x70] sm:$0xff]
        %v452 = vld [vmem:[%s412 + $0x78] sm:$0xff]
        %v453 = vld [vmem:[%s418] sm:$0xff]
        %v454 = vld [vmem:[%s418 + $0x8] sm:$0xff]
        %v455 = vld [vmem:[%s418 + $0x10] sm:$0xff]
        %v456 = vld [vmem:[%s418 + $0x18] sm:$0xff]
        %v457 = vld [vmem:[%s418 + $0x20] sm:$0xff]
        %v458 = vld [vmem:[%s418 + $0x28] sm:$0xff]
        %v459 = vld [vmem:[%s418 + $0x30] sm:$0xff]
        %v460 = vld [vmem:[%s418 + $0x38] sm:$0xff]
        %v461 = vld [vmem:[%s418 + $0x40] sm:$0xff]
        %v462 = vld [vmem:[%s418 + $0x48] sm:$0xff]
        %v463 = vld [vmem:[%s418 + $0x50] sm:$0xff]
        %v464 = vld [vmem:[%s418 + $0x58] sm:$0xff]
        %v465 = vld [vmem:[%s418 + $0x60] sm:$0xff]
        %v466 = vld [vmem:[%s418 + $0x68] sm:$0xff]
        %v467 = vld [vmem:[%s418 + $0x70] sm:$0xff]
        %v468 = vld [vmem:[%s418 + $0x78] sm:$0xff]
        %v469 = vld [vmem:[%s422] sm:$0x1]
        %v470 = vlaneseq
        %v471 = vand.u32 %v470, 127
        %472 = vset.pattern.permute.xlu0 0
        %473 = vperm.xlu0 %472, %v437
        %v474 = vpop.permute.xlu0 %473
        %475 = vset.pattern.permute.xlu0 0
        %476 = vperm.xlu0 %475, %v438
        %v477 = vpop.permute.xlu0 %476
        %478 = vset.pattern.permute.xlu0 0
        %479 = vperm.xlu0 %478, %v439
        %v480 = vpop.permute.xlu0 %479
        %481 = vset.pattern.permute.xlu0 0
        %482 = vperm.xlu0 %481, %v440
        %v483 = vpop.permute.xlu0 %482
        %484 = vset.pattern.permute.xlu0 0
        %485 = vperm.xlu0 %484, %v441
        %v486 = vpop.permute.xlu0 %485
        %487 = vset.pattern.permute.xlu0 0
        %488 = vperm.xlu0 %487, %v442
        %v489 = vpop.permute.xlu0 %488
        %490 = vset.pattern.permute.xlu0 0
        %491 = vperm.xlu0 %490, %v443
        %v492 = vpop.permute.xlu0 %491
        %493 = vset.pattern.permute.xlu0 0
        %494 = vperm.xlu0 %493, %v444
        %v495 = vpop.permute.xlu0 %494
        %496 = vset.pattern.permute.xlu0 0
        %497 = vperm.xlu0 %496, %v445
        %v498 = vpop.permute.xlu0 %497
        %499 = vset.pattern.permute.xlu0 0
        %500 = vperm.xlu0 %499, %v446
        %v501 = vpop.permute.xlu0 %500
        %502 = vset.pattern.permute.xlu0 0
        %503 = vperm.xlu0 %502, %v447
        %v504 = vpop.permute.xlu0 %503
        %505 = vset.pattern.permute.xlu0 0
        %506 = vperm.xlu0 %505, %v448
        %v507 = vpop.permute.xlu0 %506
        %508 = vset.pattern.permute.xlu0 0
        %509 = vperm.xlu0 %508, %v449
        %v510 = vpop.permute.xlu0 %509
        %511 = vset.pattern.permute.xlu0 0
        %512 = vperm.xlu0 %511, %v450
        %v513 = vpop.permute.xlu0 %512
        %514 = vset.pattern.permute.xlu0 0
        %515 = vperm.xlu0 %514, %v451
        %v516 = vpop.permute.xlu0 %515
        %517 = vset.pattern.permute.xlu0 0
        %518 = vperm.xlu0 %517, %v452
        %v519 = vpop.permute.xlu0 %518
        %vm520 = vcmp.eq.s32.totalorder %v471, %v474
        %vm521 = vcmp.eq.s32.totalorder %v471, %v477
        %vm522 = vcmp.eq.s32.totalorder %v471, %v480
        %vm523 = vcmp.eq.s32.totalorder %v471, %v483
        %vm524 = vcmp.eq.s32.totalorder %v471, %v486
        %vm525 = vcmp.eq.s32.totalorder %v471, %v489
        %vm526 = vcmp.eq.s32.totalorder %v471, %v492
        %vm527 = vcmp.eq.s32.totalorder %v471, %v495
        %vm528 = vcmp.eq.s32.totalorder %v471, %v498
        %vm529 = vcmp.eq.s32.totalorder %v471, %v501
        %vm530 = vcmp.eq.s32.totalorder %v471, %v504
        %vm531 = vcmp.eq.s32.totalorder %v471, %v507
        %vm532 = vcmp.eq.s32.totalorder %v471, %v510
        %vm533 = vcmp.eq.s32.totalorder %v471, %v513
        %vm534 = vcmp.eq.s32.totalorder %v471, %v516
        %vm535 = vcmp.eq.s32.totalorder %v471, %v519
        %v536 = vsel %vm520, 1, 0
        %v537 = vsel %vm521, 1, 0
        %v538 = vsel %vm522, 1, 0
        %v539 = vsel %vm523, 1, 0
        %v540 = vsel %vm524, 1, 0
        %v541 = vsel %vm525, 1, 0
        %v542 = vsel %vm526, 1, 0
        %v543 = vsel %vm527, 1, 0
        %v544 = vsel %vm528, 1, 0
        %v545 = vsel %vm529, 1, 0
        %v546 = vsel %vm530, 1, 0
        %v547 = vsel %vm531, 1, 0
        %v548 = vsel %vm532, 1, 0
        %v549 = vsel %vm533, 1, 0
        %v550 = vsel %vm534, 1, 0
        %v551 = vsel %vm535, 1, 0
        %v552 = vcvt.s32.f32 %v536
        %v553 = vcvt.s32.f32 %v537
        %v554 = vcvt.s32.f32 %v538
        %v555 = vcvt.s32.f32 %v539
        %v556 = vcvt.s32.f32 %v540
        %v557 = vcvt.s32.f32 %v541
        %v558 = vcvt.s32.f32 %v542
        %v559 = vcvt.s32.f32 %v543
        %v560 = vcvt.s32.f32 %v544
        %v561 = vcvt.s32.f32 %v545
        %v562 = vcvt.s32.f32 %v546
        %v563 = vcvt.s32.f32 %v547
        %v564 = vcvt.s32.f32 %v548
        %v565 = vcvt.s32.f32 %v549
        %v566 = vcvt.s32.f32 %v550
        %v567 = vcvt.s32.f32 %v551
        %568 = vset.pattern.permute.xlu0 0
        %569 = vperm.xlu0 %568, %v453
        %v570 = vpop.permute.xlu0 %569
        %571 = vset.pattern.permute.xlu0 0
        %572 = vperm.xlu0 %571, %v454
        %v573 = vpop.permute.xlu0 %572
        %574 = vset.pattern.permute.xlu0 0
        %575 = vperm.xlu0 %574, %v455
        %v576 = vpop.permute.xlu0 %575
        %577 = vset.pattern.permute.xlu0 0
        %578 = vperm.xlu0 %577, %v456
        %v579 = vpop.permute.xlu0 %578
        %580 = vset.pattern.permute.xlu0 0
        %581 = vperm.xlu0 %580, %v457
        %v582 = vpop.permute.xlu0 %581
        %583 = vset.pattern.permute.xlu0 0
        %584 = vperm.xlu0 %583, %v458
        %v585 = vpop.permute.xlu0 %584
        %586 = vset.pattern.permute.xlu0 0
        %587 = vperm.xlu0 %586, %v459
        %v588 = vpop.permute.xlu0 %587
        %589 = vset.pattern.permute.xlu0 0
        %590 = vperm.xlu0 %589, %v460
        %v591 = vpop.permute.xlu0 %590
        %592 = vset.pattern.permute.xlu0 0
        %593 = vperm.xlu0 %592, %v461
        %v594 = vpop.permute.xlu0 %593
        %595 = vset.pattern.permute.xlu0 0
        %596 = vperm.xlu0 %595, %v462
        %v597 = vpop.permute.xlu0 %596
        %598 = vset.pattern.permute.xlu0 0
        %599 = vperm.xlu0 %598, %v463
        %v600 = vpop.permute.xlu0 %599
        %601 = vset.pattern.permute.xlu0 0
        %602 = vperm.xlu0 %601, %v464
        %v603 = vpop.permute.xlu0 %602
        %604 = vset.pattern.permute.xlu0 0
        %605 = vperm.xlu0 %604, %v465
        %v606 = vpop.permute.xlu0 %605
        %607 = vset.pattern.permute.xlu0 0
        %608 = vperm.xlu0 %607, %v466
        %v609 = vpop.permute.xlu0 %608
        %610 = vset.pattern.permute.xlu0 0
        %611 = vperm.xlu0 %610, %v467
        %v612 = vpop.permute.xlu0 %611
        %613 = vset.pattern.permute.xlu0 0
        %614 = vperm.xlu0 %613, %v468
        %v615 = vpop.permute.xlu0 %614
        %vm616 = vcmp.eq.s32.totalorder %v471, %v570
        %vm617 = vcmp.eq.s32.totalorder %v471, %v573
        %vm618 = vcmp.eq.s32.totalorder %v471, %v576
        %vm619 = vcmp.eq.s32.totalorder %v471, %v579
        %vm620 = vcmp.eq.s32.totalorder %v471, %v582
        %vm621 = vcmp.eq.s32.totalorder %v471, %v585
        %vm622 = vcmp.eq.s32.totalorder %v471, %v588
        %vm623 = vcmp.eq.s32.totalorder %v471, %v591
        %vm624 = vcmp.eq.s32.totalorder %v471, %v594
        %vm625 = vcmp.eq.s32.totalorder %v471, %v597
        %vm626 = vcmp.eq.s32.totalorder %v471, %v600
        %vm627 = vcmp.eq.s32.totalorder %v471, %v603
        %vm628 = vcmp.eq.s32.totalorder %v471, %v606
        %vm629 = vcmp.eq.s32.totalorder %v471, %v609
        %vm630 = vcmp.eq.s32.totalorder %v471, %v612
        %vm631 = vcmp.eq.s32.totalorder %v471, %v615
        %v632 = vsel %vm616, 1, 0
        %v633 = vsel %vm617, 1, 0
        %v634 = vsel %vm618, 1, 0
        %v635 = vsel %vm619, 1, 0
        %v636 = vsel %vm620, 1, 0
        %v637 = vsel %vm621, 1, 0
        %v638 = vsel %vm622, 1, 0
        %v639 = vsel %vm623, 1, 0
        %v640 = vsel %vm624, 1, 0
        %v641 = vsel %vm625, 1, 0
        %v642 = vsel %vm626, 1, 0
        %v643 = vsel %vm627, 1, 0
        %v644 = vsel %vm628, 1, 0
        %v645 = vsel %vm629, 1, 0
        %v646 = vsel %vm630, 1, 0
        %v647 = vsel %vm631, 1, 0
        %v648 = vcvt.s32.f32 %v632
        %v649 = vcvt.s32.f32 %v633
        %v650 = vcvt.s32.f32 %v634
        %v651 = vcvt.s32.f32 %v635
        %v652 = vcvt.s32.f32 %v636
        %v653 = vcvt.s32.f32 %v637
        %v654 = vcvt.s32.f32 %v638
        %v655 = vcvt.s32.f32 %v639
        %v656 = vcvt.s32.f32 %v640
        %v657 = vcvt.s32.f32 %v641
        %v658 = vcvt.s32.f32 %v642
        %v659 = vcvt.s32.f32 %v643
        %v660 = vcvt.s32.f32 %v644
        %v661 = vcvt.s32.f32 %v645
        %v662 = vcvt.s32.f32 %v646
        %v663 = vcvt.s32.f32 %v647
        %v664 = vlaneseq
        %v665 = vshrl.u32 %v664, 7
        %v666 = vadd.s32 %v665, 8
        %v667 = vlaneseq
        %v668 = vshrl.u32 %v667, 7
        %v669 = vsub.s32 0, %v668
        %v670 = vrot.slane %v469, %v669
        %vm671 = vcmp.eq.s32.totalorder %v665, %v670
        %vm672 = vcmp.eq.s32.totalorder %v666, %v670
        %v673 = vsel %vm671, 1, 0
        %v674 = vsel %vm672, 1, 0
        %v675 = vcvt.s32.f32 %v673
        %v676 = vcvt.s32.f32 %v674
        %v677 = vld [vmem:[%s4] sm:$0xff]
        %v678 = vld [vmem:[%s4 + $0x8] sm:$0xff]
        %v679 = vld [vmem:[%s5] sm:$0xff]
        %v680 = vld [vmem:[%s5 + $0x8] sm:$0xff]
        %vm681 = vcmask 130048
        %v683 = vsel %vm681, %v648, 0
        %v686 = vsel %vm681, %v649, 0
        %v689 = vsel %vm681, %v650, 0
        %v692 = vsel %vm681, %v651, 0
        %v695 = vsel %vm681, %v652, 0
        %v698 = vsel %vm681, %v653, 0
        %v701 = vsel %vm681, %v654, 0
        %v704 = vsel %vm681, %v655, 0
        %v707 = vsel %vm681, %v656, 0
        %v710 = vsel %vm681, %v657, 0
        %v713 = vsel %vm681, %v658, 0
        %v716 = vsel %vm681, %v659, 0
        %v719 = vsel %vm681, %v660, 0
        %v722 = vsel %vm681, %v661, 0
        %v725 = vsel %vm681, %v662, 0
        %v728 = vsel %vm681, %v663, 0
        %730 = vmatprep.subr.mxu0 0.0
        %731 = vmatpush1.msra.mxu0 %v679
        %732 = vmatprep.subr.mxu0 0.0
        %733 = vmatpush1.msra.mxu0 %v680
        %734 = vmatprep.subr.mxu0 0.0
        %735 = vmatpush1.msra.mxu0 0.0
        %736 = vmatprep.subr.mxu0 0.0
        %737 = vmatpush1.msra.mxu0 0.0
        %738 = vmatprep.subr.mxu0 0.0
        %739 = vmatpush1.msra.mxu0 0.0
        %740 = vmatprep.subr.mxu0 0.0
        %741 = vmatpush1.msra.mxu0 0.0
        %742 = vmatprep.subr.mxu0 0.0
        %743 = vmatpush1.msra.mxu0 0.0
        %744 = vmatprep.subr.mxu0 0.0
        %745 = vmatpush1.msra.mxu0 0.0
        %746 = vmatprep.subr.mxu0 0.0
        %747 = vmatpush1.msra.mxu0 0.0
        %748 = vmatprep.subr.mxu0 0.0
        %749 = vmatpush1.msra.mxu0 0.0
        %750 = vmatprep.subr.mxu0 0.0
        %751 = vmatpush1.msra.mxu0 0.0
        %752 = vmatprep.subr.mxu0 0.0
        %753 = vmatpush1.msra.mxu0 0.0
        %754 = vmatprep.subr.mxu0 0.0
        %755 = vmatpush1.msra.mxu0 0.0
        %756 = vmatprep.subr.mxu0 0.0
        %757 = vmatpush1.msra.mxu0 0.0
        %758 = vmatprep.subr.mxu0 0.0
        %759 = vmatpush1.msra.mxu0 0.0
        %760 = vmatprep.subr.mxu0 0.0
        %761 = vmatpush1.msra.mxu0 0.0
        %762 = vmatprep.subr.mxu0 0.0
        %763 = vmatpush1.msra.mxu0 0.0
        %764 = vmatprep.subr.mxu0 0.0
        %765 = vmatpush1.msra.mxu0 0.0
        %766 = vmatprep.subr.mxu0 0.0
        %767 = vmatpush1.msra.mxu0 0.0
        %768 = vmatprep.subr.mxu0 0.0
        %769 = vmatpush1.msra.mxu0 0.0
        %770 = vmatprep.subr.mxu0 0.0
        %771 = vmatpush1.msra.mxu0 0.0
        %772 = vmatprep.subr.mxu0 0.0
        %773 = vmatpush1.msra.mxu0 0.0
        %774 = vmatprep.subr.mxu0 0.0
        %775 = vmatpush1.msra.mxu0 0.0
        %776 = vmatprep.subr.mxu0 0.0
        %777 = vmatpush1.msra.mxu0 0.0
        %778 = vmatprep.subr.mxu0 0.0
        %779 = vmatpush1.msra.mxu0 0.0
        %780 = vmatprep.subr.mxu0 0.0
        %781 = vmatpush1.msra.mxu0 0.0
        %782 = vmatprep.subr.mxu0 0.0
        %783 = vmatpush1.msra.mxu0 0.0
        %784 = vmatprep.subr.mxu0 0.0
        %785 = vmatpush1.msra.mxu0 0.0
        %786 = vmatprep.subr.mxu0 0.0
        %787 = vmatpush1.msra.mxu0 0.0
        %788 = vmatprep.subr.mxu0 0.0
        %789 = vmatpush1.msra.mxu0 0.0
        %790 = vmatprep.subr.mxu0 0.0
        %791 = vmatpush1.msra.mxu0 0.0
        %792 = vmatprep.subr.mxu0 0.0
        %793 = vmatpush1.msra.mxu0 0.0
        %794 = vmatprep.mubr.f32.mxu0 0.0
        %795 = vmatmul.mubr.f32.gmra.mrb[0].mxu0 %v683
        %v796 = vpop.f32.mrb[0].mxu0
        %v797 = vadd.f32 0.0, %v796
        %v798 = vpop.f32.mrb[0].mxu0
        %799 = vmatprep.mubr.f32.mxu0 0.0
        %800 = vmatmul.mubr.f32.gmra.mrb[0].mxu0 %v686
        %v801 = vpop.f32.mrb[0].mxu0
        %v802 = vadd.f32 0.0, %v801
        %v803 = vpop.f32.mrb[0].mxu0
        %804 = vmatprep.mubr.f32.mxu0 0.0
        %805 = vmatmul.mubr.f32.gmra.mrb[0].mxu0 %v689
        %v806 = vpop.f32.mrb[0].mxu0
        %v807 = vadd.f32 0.0, %v806
        %v808 = vpop.f32.mrb[0].mxu0
        %809 = vmatprep.mubr.f32.mxu0 0.0
        %810 = vmatmul.mubr.f32.gmra.mrb[0].mxu0 %v692
        %v811 = vpop.f32.mrb[0].mxu0
        %v812 = vadd.f32 0.0, %v811
        %v813 = vpop.f32.mrb[0].mxu0
        %814 = vmatprep.mubr.f32.mxu0 0.0
        %815 = vmatmul.mubr.f32.gmra.mrb[0].mxu0 %v695
        %v816 = vpop.f32.mrb[0].mxu0
        %v817 = vadd.f32 0.0, %v816
        %v818 = vpop.f32.mrb[0].mxu0
        %819 = vmatprep.mubr.f32.mxu0 0.0
        %820 = vmatmul.mubr.f32.gmra.mrb[0].mxu0 %v698
        %v821 = vpop.f32.mrb[0].mxu0
        %v822 = vadd.f32 0.0, %v821
        %v823 = vpop.f32.mrb[0].mxu0
        %824 = vmatprep.mubr.f32.mxu0 0.0
        %825 = vmatmul.mubr.f32.gmra.mrb[0].mxu0 %v701
        %v826 = vpop.f32.mrb[0].mxu0
        %v827 = vadd.f32 0.0, %v826
        %v828 = vpop.f32.mrb[0].mxu0
        %829 = vmatprep.mubr.f32.mxu0 0.0
        %830 = vmatmul.mubr.f32.gmra.mrb[0].mxu0 %v704
        %v831 = vpop.f32.mrb[0].mxu0
        %v832 = vadd.f32 0.0, %v831
        %v833 = vpop.f32.mrb[0].mxu0
        %834 = vmatprep.mubr.f32.mxu0 0.0
        %835 = vmatmul.mubr.f32.gmra.mrb[0].mxu0 %v707
        %v836 = vpop.f32.mrb[0].mxu0
        %v837 = vadd.f32 0.0, %v836
        %v838 = vpop.f32.mrb[0].mxu0
        %839 = vmatprep.mubr.f32.mxu0 0.0
        %840 = vmatmul.mubr.f32.gmra.mrb[0].mxu0 %v710
        %v841 = vpop.f32.mrb[0].mxu0
        %v842 = vadd.f32 0.0, %v841
        %v843 = vpop.f32.mrb[0].mxu0
        %844 = vmatprep.mubr.f32.mxu0 0.0
        %845 = vmatmul.mubr.f32.gmra.mrb[0].mxu0 %v713
        %v846 = vpop.f32.mrb[0].mxu0
        %v847 = vadd.f32 0.0, %v846
        %v848 = vpop.f32.mrb[0].mxu0
        %849 = vmatprep.mubr.f32.mxu0 0.0
        %850 = vmatmul.mubr.f32.gmra.mrb[0].mxu0 %v716
        %v851 = vpop.f32.mrb[0].mxu0
        %v852 = vadd.f32 0.0, %v851
        %v853 = vpop.f32.mrb[0].mxu0
        %854 = vmatprep.mubr.f32.mxu0 0.0
        %855 = vmatmul.mubr.f32.gmra.mrb[0].mxu0 %v719
        %v856 = vpop.f32.mrb[0].mxu0
        %v857 = vadd.f32 0.0, %v856
        %v858 = vpop.f32.mrb[0].mxu0
        %859 = vmatprep.mubr.f32.mxu0 0.0
        %860 = vmatmul.mubr.f32.gmra.mrb[0].mxu0 %v722
        %v861 = vpop.f32.mrb[0].mxu0
        %v862 = vadd.f32 0.0, %v861
        %v863 = vpop.f32.mrb[0].mxu0
        %864 = vmatprep.mubr.f32.mxu0 0.0
        %865 = vmatmul.mubr.f32.gmra.mrb[0].mxu0 %v725
        %v866 = vpop.f32.mrb[0].mxu0
        %v867 = vadd.f32 0.0, %v866
        %v868 = vpop.f32.mrb[0].mxu0
        %869 = vmatprep.mubr.f32.mxu0 0.0
        %870 = vmatmul.mubr.f32.gmra.mrb[0].mxu0 %v728
        %v871 = vpop.f32.mrb[0].mxu0
        %v872 = vadd.f32 0.0, %v871
        %v873 = vpop.f32.mrb[0].mxu0
        %874 = vdwg.mxu0
        %v875 = vld [vmem:[%s427] sm:$0xff]
        %v876 = vld [vmem:[%s427 + $0x8] sm:$0xff]
        %v877 = vld [vmem:[%s427 + $0x10] sm:$0xff]
        %v878 = vld [vmem:[%s427 + $0x18] sm:$0xff]
        %v879 = vld [vmem:[%s427 + $0x20] sm:$0xff]
        %v880 = vld [vmem:[%s427 + $0x28] sm:$0xff]
        %v881 = vld [vmem:[%s427 + $0x30] sm:$0xff]
        %v882 = vld [vmem:[%s427 + $0x38] sm:$0xff]
        %v883 = vld [vmem:[%s427 + $0x40] sm:$0xff]
        %v884 = vld [vmem:[%s427 + $0x48] sm:$0xff]
        %v885 = vld [vmem:[%s427 + $0x50] sm:$0xff]
        %v886 = vld [vmem:[%s427 + $0x58] sm:$0xff]
        %v887 = vld [vmem:[%s427 + $0x60] sm:$0xff]
        %v888 = vld [vmem:[%s427 + $0x68] sm:$0xff]
        %v889 = vld [vmem:[%s427 + $0x70] sm:$0xff]
        %v890 = vld [vmem:[%s427 + $0x78] sm:$0xff]
        %v891 = vld [vmem:[%s6] sm:$0xff]
        %v892 = vld [vmem:[%s6 + $0x8] sm:$0xff]
        %v894 = vsel %vm681, %v875, 0
        %v897 = vsel %vm681, %v876, 0
        %v900 = vsel %vm681, %v877, 0
        %v903 = vsel %vm681, %v878, 0
        %v906 = vsel %vm681, %v879, 0
        %v909 = vsel %vm681, %v880, 0
        %v912 = vsel %vm681, %v881, 0
        %v915 = vsel %vm681, %v882, 0
        %v918 = vsel %vm681, %v883, 0
        %v921 = vsel %vm681, %v884, 0
        %v924 = vsel %vm681, %v885, 0
        %v927 = vsel %vm681, %v886, 0
        %v930 = vsel %vm681, %v887, 0
        %v933 = vsel %vm681, %v888, 0
        %v936 = vsel %vm681, %v889, 0
        %v939 = vsel %vm681, %v890, 0
        %941 = vmatprep.subr.mxu0 0.0
        %942 = vmatpush1.msra.mxu0 %v891
        %943 = vmatprep.subr.mxu0 0.0
        %944 = vmatpush1.msra.mxu0 %v892
        %945 = vmatprep.subr.mxu0 0.0
        %946 = vmatpush1.msra.mxu0 0.0
        %947 = vmatprep.subr.mxu0 0.0
        %948 = vmatpush1.msra.mxu0 0.0
        %949 = vmatprep.subr.mxu0 0.0
        %950 = vmatpush1.msra.mxu0 0.0
        %951 = vmatprep.subr.mxu0 0.0
        %952 = vmatpush1.msra.mxu0 0.0
        %953 = vmatprep.subr.mxu0 0.0
        %954 = vmatpush1.msra.mxu0 0.0
        %955 = vmatprep.subr.mxu0 0.0
        %956 = vmatpush1.msra.mxu0 0.0
        %957 = vmatprep.subr.mxu0 0.0
        %958 = vmatpush1.msra.mxu0 0.0
        %959 = vmatprep.subr.mxu0 0.0
        %960 = vmatpush1.msra.mxu0 0.0
        %961 = vmatprep.subr.mxu0 0.0
        %962 = vmatpush1.msra.mxu0 0.0
        %963 = vmatprep.subr.mxu0 0.0
        %964 = vmatpush1.msra.mxu0 0.0
        %965 = vmatprep.subr.mxu0 0.0
        %966 = vmatpush1.msra.mxu0 0.0
        %967 = vmatprep.subr.mxu0 0.0
        %968 = vmatpush1.msra.mxu0 0.0
        %969 = vmatprep.subr.mxu0 0.0
        %970 = vmatpush1.msra.mxu0 0.0
        %971 = vmatprep.subr.mxu0 0.0
        %972 = vmatpush1.msra.mxu0 0.0
        %973 = vmatprep.subr.mxu0 0.0
        %974 = vmatpush1.msra.mxu0 0.0
        %975 = vmatprep.subr.mxu0 0.0
        %976 = vmatpush1.msra.mxu0 0.0
        %977 = vmatprep.subr.mxu0 0.0
        %978 = vmatpush1.msra.mxu0 0.0
        %979 = vmatprep.subr.mxu0 0.0
        %980 = vmatpush1.msra.mxu0 0.0
        %981 = vmatprep.subr.mxu0 0.0
        %982 = vmatpush1.msra.mxu0 0.0
        %983 = vmatprep.subr.mxu0 0.0
        %984 = vmatpush1.msra.mxu0 0.0
        %985 = vmatprep.subr.mxu0 0.0
        %986 = vmatpush1.msra.mxu0 0.0
        %987 = vmatprep.subr.mxu0 0.0
        %988 = vmatpush1.msra.mxu0 0.0
        %989 = vmatprep.subr.mxu0 0.0
        %990 = vmatpush1.msra.mxu0 0.0
        %991 = vmatprep.subr.mxu0 0.0
        %992 = vmatpush1.msra.mxu0 0.0
        %993 = vmatprep.subr.mxu0 0.0
        %994 = vmatpush1.msra.mxu0 0.0
        %995 = vmatprep.subr.mxu0 0.0
        %996 = vmatpush1.msra.mxu0 0.0
        %997 = vmatprep.subr.mxu0 0.0
        %998 = vmatpush1.msra.mxu0 0.0
        %999 = vmatprep.subr.mxu0 0.0
        %1000 = vmatpush1.msra.mxu0 0.0
        %1001 = vmatprep.subr.mxu0 0.0
        %1002 = vmatpush1.msra.mxu0 0.0
        %1003 = vmatprep.subr.mxu0 0.0
        %1004 = vmatpush1.msra.mxu0 0.0
        %1005 = vmatprep.mubr.f32.mxu0 0.0
        %1006 = vmatmul.mubr.f32.gmra.mrb[0].mxu0 %v894
        %v1007 = vpop.f32.mrb[0].mxu0
        %v1008 = vadd.f32 0.0, %v1007
        %v1009 = vpop.f32.mrb[0].mxu0
        %1010 = vmatprep.mubr.f32.mxu0 0.0
        %1011 = vmatmul.mubr.f32.gmra.mrb[0].mxu0 %v897
        %v1012 = vpop.f32.mrb[0].mxu0
        %v1013 = vadd.f32 0.0, %v1012
        %v1014 = vpop.f32.mrb[0].mxu0
        %1015 = vmatprep.mubr.f32.mxu0 0.0
        %1016 = vmatmul.mubr.f32.gmra.mrb[0].mxu0 %v900
        %v1017 = vpop.f32.mrb[0].mxu0
        %v1018 = vadd.f32 0.0, %v1017
        %v1019 = vpop.f32.mrb[0].mxu0
        %1020 = vmatprep.mubr.f32.mxu0 0.0
        %1021 = vmatmul.mubr.f32.gmra.mrb[0].mxu0 %v903
        %v1022 = vpop.f32.mrb[0].mxu0
        %v1023 = vadd.f32 0.0, %v1022
        %v1024 = vpop.f32.mrb[0].mxu0
        %1025 = vmatprep.mubr.f32.mxu0 0.0
        %1026 = vmatmul.mubr.f32.gmra.mrb[0].mxu0 %v906
        %v1027 = vpop.f32.mrb[0].mxu0
        %v1028 = vadd.f32 0.0, %v1027
        %v1029 = vpop.f32.mrb[0].mxu0
        %1030 = vmatprep.mubr.f32.mxu0 0.0
        %1031 = vmatmul.mubr.f32.gmra.mrb[0].mxu0 %v909
        %v1032 = vpop.f32.mrb[0].mxu0
        %v1033 = vadd.f32 0.0, %v1032
        %v1034 = vpop.f32.mrb[0].mxu0
        %1035 = vmatprep.mubr.f32.mxu0 0.0
        %1036 = vmatmul.mubr.f32.gmra.mrb[0].mxu0 %v912
        %v1037 = vpop.f32.mrb[0].mxu0
        %v1038 = vadd.f32 0.0, %v1037
        %v1039 = vpop.f32.mrb[0].mxu0
        %1040 = vmatprep.mubr.f32.mxu0 0.0
        %1041 = vmatmul.mubr.f32.gmra.mrb[0].mxu0 %v915
        %v1042 = vpop.f32.mrb[0].mxu0
        %v1043 = vadd.f32 0.0, %v1042
        %v1044 = vpop.f32.mrb[0].mxu0
        %1045 = vmatprep.mubr.f32.mxu0 0.0
        %1046 = vmatmul.mubr.f32.gmra.mrb[0].mxu0 %v918
        %v1047 = vpop.f32.mrb[0].mxu0
        %v1048 = vadd.f32 0.0, %v1047
        %v1049 = vpop.f32.mrb[0].mxu0
        %1050 = vmatprep.mubr.f32.mxu0 0.0
        %1051 = vmatmul.mubr.f32.gmra.mrb[0].mxu0 %v921
        %v1052 = vpop.f32.mrb[0].mxu0
        %v1053 = vadd.f32 0.0, %v1052
        %v1054 = vpop.f32.mrb[0].mxu0
        %1055 = vmatprep.mubr.f32.mxu0 0.0
        %1056 = vmatmul.mubr.f32.gmra.mrb[0].mxu0 %v924
        %v1057 = vpop.f32.mrb[0].mxu0
        %v1058 = vadd.f32 0.0, %v1057
        %v1059 = vpop.f32.mrb[0].mxu0
        %1060 = vmatprep.mubr.f32.mxu0 0.0
        %1061 = vmatmul.mubr.f32.gmra.mrb[0].mxu0 %v927
        %v1062 = vpop.f32.mrb[0].mxu0
        %v1063 = vadd.f32 0.0, %v1062
        %v1064 = vpop.f32.mrb[0].mxu0
        %1065 = vmatprep.mubr.f32.mxu0 0.0
        %1066 = vmatmul.mubr.f32.gmra.mrb[0].mxu0 %v930
        %v1067 = vpop.f32.mrb[0].mxu0
        %v1068 = vadd.f32 0.0, %v1067
        %v1069 = vpop.f32.mrb[0].mxu0
        %1070 = vmatprep.mubr.f32.mxu0 0.0
        %1071 = vmatmul.mubr.f32.gmra.mrb[0].mxu0 %v933
        %v1072 = vpop.f32.mrb[0].mxu0
        %v1073 = vadd.f32 0.0, %v1072
        %v1074 = vpop.f32.mrb[0].mxu0
        %1075 = vmatprep.mubr.f32.mxu0 0.0
        %1076 = vmatmul.mubr.f32.gmra.mrb[0].mxu0 %v936
        %v1077 = vpop.f32.mrb[0].mxu0
        %v1078 = vadd.f32 0.0, %v1077
        %v1079 = vpop.f32.mrb[0].mxu0
        %1080 = vmatprep.mubr.f32.mxu0 0.0
        %1081 = vmatmul.mubr.f32.gmra.mrb[0].mxu0 %v939
        %v1082 = vpop.f32.mrb[0].mxu0
        %v1083 = vadd.f32 0.0, %v1082
        %v1084 = vpop.f32.mrb[0].mxu0
        %1085 = vdwg.mxu0
        %v1087 = vsel %vm681, %v552, 0
        %v1090 = vsel %vm681, %v553, 0
        %v1093 = vsel %vm681, %v554, 0
        %v1096 = vsel %vm681, %v555, 0
        %v1099 = vsel %vm681, %v556, 0
        %v1102 = vsel %vm681, %v557, 0
        %v1105 = vsel %vm681, %v558, 0
        %v1108 = vsel %vm681, %v559, 0
        %v1111 = vsel %vm681, %v560, 0
        %v1114 = vsel %vm681, %v561, 0
        %v1117 = vsel %vm681, %v562, 0
        %v1120 = vsel %vm681, %v563, 0
        %v1123 = vsel %vm681, %v564, 0
        %v1126 = vsel %vm681, %v565, 0
        %v1129 = vsel %vm681, %v566, 0
        %v1132 = vsel %vm681, %v567, 0
        %1134 = vmatprep.subr.mxu0 0.0
        %1135 = vmatpush1.msra.mxu0 %v677
        %1136 = vmatprep.subr.mxu0 0.0
        %1137 = vmatpush1.msra.mxu0 %v678
        %1138 = vmatprep.subr.mxu0 0.0
        %1139 = vmatpush1.msra.mxu0 0.0
        %1140 = vmatprep.subr.mxu0 0.0
        %1141 = vmatpush1.msra.mxu0 0.0
        %1142 = vmatprep.subr.mxu0 0.0
        %1143 = vmatpush1.msra.mxu0 0.0
        %1144 = vmatprep.subr.mxu0 0.0
        %1145 = vmatpush1.msra.mxu0 0.0
        %1146 = vmatprep.subr.mxu0 0.0
        %1147 = vmatpush1.msra.mxu0 0.0
        %1148 = vmatprep.subr.mxu0 0.0
        %1149 = vmatpush1.msra.mxu0 0.0
        %1150 = vmatprep.subr.mxu0 0.0
        %1151 = vmatpush1.msra.mxu0 0.0
        %1152 = vmatprep.subr.mxu0 0.0
        %1153 = vmatpush1.msra.mxu0 0.0
        %1154 = vmatprep.subr.mxu0 0.0
        %1155 = vmatpush1.msra.mxu0 0.0
        %1156 = vmatprep.subr.mxu0 0.0
        %1157 = vmatpush1.msra.mxu0 0.0
        %1158 = vmatprep.subr.mxu0 0.0
        %1159 = vmatpush1.msra.mxu0 0.0
        %1160 = vmatprep.subr.mxu0 0.0
        %1161 = vmatpush1.msra.mxu0 0.0
        %1162 = vmatprep.subr.mxu0 0.0
        %1163 = vmatpush1.msra.mxu0 0.0
        %1164 = vmatprep.subr.mxu0 0.0
        %1165 = vmatpush1.msra.mxu0 0.0
        %1166 = vmatprep.subr.mxu0 0.0
        %1167 = vmatpush1.msra.mxu0 0.0
        %1168 = vmatprep.subr.mxu0 0.0
        %1169 = vmatpush1.msra.mxu0 0.0
        %1170 = vmatprep.subr.mxu0 0.0
        %1171 = vmatpush1.msra.mxu0 0.0
        %1172 = vmatprep.subr.mxu0 0.0
        %1173 = vmatpush1.msra.mxu0 0.0
        %1174 = vmatprep.subr.mxu0 0.0
        %1175 = vmatpush1.msra.mxu0 0.0
        %1176 = vmatprep.subr.mxu0 0.0
        %1177 = vmatpush1.msra.mxu0 0.0
        %1178 = vmatprep.subr.mxu0 0.0
        %1179 = vmatpush1.msra.mxu0 0.0
        %1180 = vmatprep.subr.mxu0 0.0
        %1181 = vmatpush1.msra.mxu0 0.0
        %1182 = vmatprep.subr.mxu0 0.0
        %1183 = vmatpush1.msra.mxu0 0.0
        %1184 = vmatprep.subr.mxu0 0.0
        %1185 = vmatpush1.msra.mxu0 0.0
        %1186 = vmatprep.subr.mxu0 0.0
        %1187 = vmatpush1.msra.mxu0 0.0
        %1188 = vmatprep.subr.mxu0 0.0
        %1189 = vmatpush1.msra.mxu0 0.0
        %1190 = vmatprep.subr.mxu0 0.0
        %1191 = vmatpush1.msra.mxu0 0.0
        %1192 = vmatprep.subr.mxu0 0.0
        %1193 = vmatpush1.msra.mxu0 0.0
        %1194 = vmatprep.subr.mxu0 0.0
        %1195 = vmatpush1.msra.mxu0 0.0
        %1196 = vmatprep.subr.mxu0 0.0
        %1197 = vmatpush1.msra.mxu0 0.0
        %1198 = vmatprep.mubr.f32.mxu0 0.0
        %1199 = vmatmul.mubr.f32.gmra.mrb[0].mxu0 %v1087
        %v1200 = vpop.f32.mrb[0].mxu0
        %v1201 = vadd.f32 %v797, %v1200
        %v1202 = vpop.f32.mrb[0].mxu0
        %1203 = vmatprep.mubr.f32.mxu0 0.0
        %1204 = vmatmul.mubr.f32.gmra.mrb[0].mxu0 %v1090
        %v1205 = vpop.f32.mrb[0].mxu0
        %v1206 = vadd.f32 %v802, %v1205
        %v1207 = vpop.f32.mrb[0].mxu0
        %1208 = vmatprep.mubr.f32.mxu0 0.0
        %1209 = vmatmul.mubr.f32.gmra.mrb[0].mxu0 %v1093
        %v1210 = vpop.f32.mrb[0].mxu0
        %v1211 = vadd.f32 %v807, %v1210
        %v1212 = vpop.f32.mrb[0].mxu0
        %1213 = vmatprep.mubr.f32.mxu0 0.0
        %1214 = vmatmul.mubr.f32.gmra.mrb[0].mxu0 %v1096
        %v1215 = vpop.f32.mrb[0].mxu0
        %v1216 = vadd.f32 %v812, %v1215
        %v1217 = vpop.f32.mrb[0].mxu0
        %1218 = vmatprep.mubr.f32.mxu0 0.0
        %1219 = vmatmul.mubr.f32.gmra.mrb[0].mxu0 %v1099
        %v1220 = vpop.f32.mrb[0].mxu0
        %v1221 = vadd.f32 %v817, %v1220
        %v1222 = vpop.f32.mrb[0].mxu0
        %1223 = vmatprep.mubr.f32.mxu0 0.0
        %1224 = vmatmul.mubr.f32.gmra.mrb[0].mxu0 %v1102
        %v1225 = vpop.f32.mrb[0].mxu0
        %v1226 = vadd.f32 %v822, %v1225
        %v1227 = vpop.f32.mrb[0].mxu0
        %1228 = vmatprep.mubr.f32.mxu0 0.0
        %1229 = vmatmul.mubr.f32.gmra.mrb[0].mxu0 %v1105
        %v1230 = vpop.f32.mrb[0].mxu0
        %v1231 = vadd.f32 %v827, %v1230
        %v1232 = vpop.f32.mrb[0].mxu0
        %1233 = vmatprep.mubr.f32.mxu0 0.0
        %1234 = vmatmul.mubr.f32.gmra.mrb[0].mxu0 %v1108
        %v1235 = vpop.f32.mrb[0].mxu0
        %v1236 = vadd.f32 %v832, %v1235
        %v1237 = vpop.f32.mrb[0].mxu0
        %1238 = vmatprep.mubr.f32.mxu0 0.0
        %1239 = vmatmul.mubr.f32.gmra.mrb[0].mxu0 %v1111
        %v1240 = vpop.f32.mrb[0].mxu0
        %v1241 = vadd.f32 %v837, %v1240
        %v1242 = vpop.f32.mrb[0].mxu0
        %1243 = vmatprep.mubr.f32.mxu0 0.0
        %1244 = vmatmul.mubr.f32.gmra.mrb[0].mxu0 %v1114
        %v1245 = vpop.f32.mrb[0].mxu0
        %v1246 = vadd.f32 %v842, %v1245
        %v1247 = vpop.f32.mrb[0].mxu0
        %1248 = vmatprep.mubr.f32.mxu0 0.0
        %1249 = vmatmul.mubr.f32.gmra.mrb[0].mxu0 %v1117
        %v1250 = vpop.f32.mrb[0].mxu0
        %v1251 = vadd.f32 %v847, %v1250
        %v1252 = vpop.f32.mrb[0].mxu0
        %1253 = vmatprep.mubr.f32.mxu0 0.0
        %1254 = vmatmul.mubr.f32.gmra.mrb[0].mxu0 %v1120
        %v1255 = vpop.f32.mrb[0].mxu0
        %v1256 = vadd.f32 %v852, %v1255
        %v1257 = vpop.f32.mrb[0].mxu0
        %1258 = vmatprep.mubr.f32.mxu0 0.0
        %1259 = vmatmul.mubr.f32.gmra.mrb[0].mxu0 %v1123
        %v1260 = vpop.f32.mrb[0].mxu0
        %v1261 = vadd.f32 %v857, %v1260
        %v1262 = vpop.f32.mrb[0].mxu0
        %1263 = vmatprep.mubr.f32.mxu0 0.0
        %1264 = vmatmul.mubr.f32.gmra.mrb[0].mxu0 %v1126
        %v1265 = vpop.f32.mrb[0].mxu0
        %v1266 = vadd.f32 %v862, %v1265
        %v1267 = vpop.f32.mrb[0].mxu0
        %1268 = vmatprep.mubr.f32.mxu0 0.0
        %1269 = vmatmul.mubr.f32.gmra.mrb[0].mxu0 %v1129
        %v1270 = vpop.f32.mrb[0].mxu0
        %v1271 = vadd.f32 %v867, %v1270
        %v1272 = vpop.f32.mrb[0].mxu0
        %1273 = vmatprep.mubr.f32.mxu0 0.0
        %1274 = vmatmul.mubr.f32.gmra.mrb[0].mxu0 %v1132
        %v1275 = vpop.f32.mrb[0].mxu0
        %v1276 = vadd.f32 %v872, %v1275
        %v1277 = vpop.f32.mrb[0].mxu0
        %1278 = vdwg.mxu0
        %v1279 = vadd.f32 %v1201, %v1008
        %v1280 = vadd.f32 %v1206, %v1013
        %v1281 = vadd.f32 %v1211, %v1018
        %v1282 = vadd.f32 %v1216, %v1023
        %v1283 = vadd.f32 %v1221, %v1028
        %v1284 = vadd.f32 %v1226, %v1033
        %v1285 = vadd.f32 %v1231, %v1038
        %v1286 = vadd.f32 %v1236, %v1043
        %v1287 = vadd.f32 %v1241, %v1048
        %v1288 = vadd.f32 %v1246, %v1053
        %v1289 = vadd.f32 %v1251, %v1058
        %v1290 = vadd.f32 %v1256, %v1063
        %v1291 = vadd.f32 %v1261, %v1068
        %v1292 = vadd.f32 %v1266, %v1073
        %v1293 = vadd.f32 %v1271, %v1078
        %v1294 = vadd.f32 %v1276, %v1083
        %v1295 = vld [vmem:[%s7] sm:$0xff]
        %v1296 = vld [vmem:[%s7 + $0x8] sm:$0xff]
        %v1297 = vld [vmem:[%s7 + $0x10] sm:$0xff]
        %v1298 = vld [vmem:[%s7 + $0x18] sm:$0xff]
        %vm1299 = vcmask 261120
        %v1301 = vsel %vm1299, %v1279, 0
        %v1304 = vsel %vm1299, %v1280, 0
        %v1307 = vsel %vm1299, %v1281, 0
        %v1310 = vsel %vm1299, %v1282, 0
        %v1313 = vsel %vm1299, %v1283, 0
        %v1316 = vsel %vm1299, %v1284, 0
        %v1319 = vsel %vm1299, %v1285, 0
        %v1322 = vsel %vm1299, %v1286, 0
        %v1325 = vsel %vm1299, %v1287, 0
        %v1328 = vsel %vm1299, %v1288, 0
        %v1331 = vsel %vm1299, %v1289, 0
        %v1334 = vsel %vm1299, %v1290, 0
        %v1337 = vsel %vm1299, %v1291, 0
        %v1340 = vsel %vm1299, %v1292, 0
        %v1343 = vsel %vm1299, %v1293, 0
        %v1346 = vsel %vm1299, %v1294, 0
        %1348 = vmatprep.subr.mxu0 0.0
        %1349 = vmatpush1.msra.mxu0 %v1295
        %1350 = vmatprep.subr.mxu0 0.0
        %1351 = vmatpush1.msra.mxu0 %v1296
        %1352 = vmatprep.subr.mxu0 0.0
        %1353 = vmatpush1.msra.mxu0 %v1297
        %1354 = vmatprep.subr.mxu0 0.0
        %1355 = vmatpush1.msra.mxu0 %v1298
        %1356 = vmatprep.subr.mxu0 0.0
        %1357 = vmatpush1.msra.mxu0 0.0
        %1358 = vmatprep.subr.mxu0 0.0
        %1359 = vmatpush1.msra.mxu0 0.0
        %1360 = vmatprep.subr.mxu0 0.0
        %1361 = vmatpush1.msra.mxu0 0.0
        %1362 = vmatprep.subr.mxu0 0.0
        %1363 = vmatpush1.msra.mxu0 0.0
        %1364 = vmatprep.subr.mxu0 0.0
        %1365 = vmatpush1.msra.mxu0 0.0
        %1366 = vmatprep.subr.mxu0 0.0
        %1367 = vmatpush1.msra.mxu0 0.0
        %1368 = vmatprep.subr.mxu0 0.0
        %1369 = vmatpush1.msra.mxu0 0.0
        %1370 = vmatprep.subr.mxu0 0.0
        %1371 = vmatpush1.msra.mxu0 0.0
        %1372 = vmatprep.subr.mxu0 0.0
        %1373 = vmatpush1.msra.mxu0 0.0
        %1374 = vmatprep.subr.mxu0 0.0
        %1375 = vmatpush1.msra.mxu0 0.0
        %1376 = vmatprep.subr.mxu0 0.0
        %1377 = vmatpush1.msra.mxu0 0.0
        %1378 = vmatprep.subr.mxu0 0.0
        %1379 = vmatpush1.msra.mxu0 0.0
        %1380 = vmatprep.subr.mxu0 0.0
        %1381 = vmatpush1.msra.mxu0 0.0
        %1382 = vmatprep.subr.mxu0 0.0
        %1383 = vmatpush1.msra.mxu0 0.0
        %1384 = vmatprep.subr.mxu0 0.0
        %1385 = vmatpush1.msra.mxu0 0.0
        %1386 = vmatprep.subr.mxu0 0.0
        %1387 = vmatpush1.msra.mxu0 0.0
        %1388 = vmatprep.subr.mxu0 0.0
        %1389 = vmatpush1.msra.mxu0 0.0
        %1390 = vmatprep.subr.mxu0 0.0
        %1391 = vmatpush1.msra.mxu0 0.0
        %1392 = vmatprep.subr.mxu0 0.0
        %1393 = vmatpush1.msra.mxu0 0.0
        %1394 = vmatprep.subr.mxu0 0.0
        %1395 = vmatpush1.msra.mxu0 0.0
        %1396 = vmatprep.subr.mxu0 0.0
        %1397 = vmatpush1.msra.mxu0 0.0
        %1398 = vmatprep.subr.mxu0 0.0
        %1399 = vmatpush1.msra.mxu0 0.0
        %1400 = vmatprep.subr.mxu0 0.0
        %1401 = vmatpush1.msra.mxu0 0.0
        %1402 = vmatprep.subr.mxu0 0.0
        %1403 = vmatpush1.msra.mxu0 0.0
        %1404 = vmatprep.subr.mxu0 0.0
        %1405 = vmatpush1.msra.mxu0 0.0
        %1406 = vmatprep.subr.mxu0 0.0
        %1407 = vmatpush1.msra.mxu0 0.0
        %1408 = vmatprep.subr.mxu0 0.0
        %1409 = vmatpush1.msra.mxu0 0.0
        %1410 = vmatprep.subr.mxu0 0.0
        %1411 = vmatpush1.msra.mxu0 0.0
        %1412 = vmatprep.mubr.f32.mxu0 0.0
        %1413 = vmatmul.mubr.f32.gmra.mrb[0].mxu0 %v1301
        %v1414 = vpop.f32.mrb[0].mxu0
        %v1415 = vadd.f32 0.0, %v1414
        %v1416 = vpop.f32.mrb[0].mxu0
        %1417 = vmatprep.mubr.f32.mxu0 0.0
        %1418 = vmatmul.mubr.f32.gmra.mrb[0].mxu0 %v1304
        %v1419 = vpop.f32.mrb[0].mxu0
        %v1420 = vadd.f32 0.0, %v1419
        %v1421 = vpop.f32.mrb[0].mxu0
        %1422 = vmatprep.mubr.f32.mxu0 0.0
        %1423 = vmatmul.mubr.f32.gmra.mrb[0].mxu0 %v1307
        %v1424 = vpop.f32.mrb[0].mxu0
        %v1425 = vadd.f32 0.0, %v1424
        %v1426 = vpop.f32.mrb[0].mxu0
        %1427 = vmatprep.mubr.f32.mxu0 0.0
        %1428 = vmatmul.mubr.f32.gmra.mrb[0].mxu0 %v1310
        %v1429 = vpop.f32.mrb[0].mxu0
        %v1430 = vadd.f32 0.0, %v1429
        %v1431 = vpop.f32.mrb[0].mxu0
        %1432 = vmatprep.mubr.f32.mxu0 0.0
        %1433 = vmatmul.mubr.f32.gmra.mrb[0].mxu0 %v1313
        %v1434 = vpop.f32.mrb[0].mxu0
        %v1435 = vadd.f32 0.0, %v1434
        %v1436 = vpop.f32.mrb[0].mxu0
        %1437 = vmatprep.mubr.f32.mxu0 0.0
        %1438 = vmatmul.mubr.f32.gmra.mrb[0].mxu0 %v1316
        %v1439 = vpop.f32.mrb[0].mxu0
        %v1440 = vadd.f32 0.0, %v1439
        %v1441 = vpop.f32.mrb[0].mxu0
        %1442 = vmatprep.mubr.f32.mxu0 0.0
        %1443 = vmatmul.mubr.f32.gmra.mrb[0].mxu0 %v1319
        %v1444 = vpop.f32.mrb[0].mxu0
        %v1445 = vadd.f32 0.0, %v1444
        %v1446 = vpop.f32.mrb[0].mxu0
        %1447 = vmatprep.mubr.f32.mxu0 0.0
        %1448 = vmatmul.mubr.f32.gmra.mrb[0].mxu0 %v1322
        %v1449 = vpop.f32.mrb[0].mxu0
        %v1450 = vadd.f32 0.0, %v1449
        %v1451 = vpop.f32.mrb[0].mxu0
        %1452 = vmatprep.mubr.f32.mxu0 0.0
        %1453 = vmatmul.mubr.f32.gmra.mrb[0].mxu0 %v1325
        %v1454 = vpop.f32.mrb[0].mxu0
        %v1455 = vadd.f32 0.0, %v1454
        %v1456 = vpop.f32.mrb[0].mxu0
        %1457 = vmatprep.mubr.f32.mxu0 0.0
        %1458 = vmatmul.mubr.f32.gmra.mrb[0].mxu0 %v1328
        %v1459 = vpop.f32.mrb[0].mxu0
        %v1460 = vadd.f32 0.0, %v1459
        %v1461 = vpop.f32.mrb[0].mxu0
        %1462 = vmatprep.mubr.f32.mxu0 0.0
        %1463 = vmatmul.mubr.f32.gmra.mrb[0].mxu0 %v1331
        %v1464 = vpop.f32.mrb[0].mxu0
        %v1465 = vadd.f32 0.0, %v1464
        %v1466 = vpop.f32.mrb[0].mxu0
        %1467 = vmatprep.mubr.f32.mxu0 0.0
        %1468 = vmatmul.mubr.f32.gmra.mrb[0].mxu0 %v1334
        %v1469 = vpop.f32.mrb[0].mxu0
        %v1470 = vadd.f32 0.0, %v1469
        %v1471 = vpop.f32.mrb[0].mxu0
        %1472 = vmatprep.mubr.f32.mxu0 0.0
        %1473 = vmatmul.mubr.f32.gmra.mrb[0].mxu0 %v1337
        %v1474 = vpop.f32.mrb[0].mxu0
        %v1475 = vadd.f32 0.0, %v1474
        %v1476 = vpop.f32.mrb[0].mxu0
        %1477 = vmatprep.mubr.f32.mxu0 0.0
        %1478 = vmatmul.mubr.f32.gmra.mrb[0].mxu0 %v1340
        %v1479 = vpop.f32.mrb[0].mxu0
        %v1480 = vadd.f32 0.0, %v1479
        %v1481 = vpop.f32.mrb[0].mxu0
        %1482 = vmatprep.mubr.f32.mxu0 0.0
        %1483 = vmatmul.mubr.f32.gmra.mrb[0].mxu0 %v1343
        %v1484 = vpop.f32.mrb[0].mxu0
        %v1485 = vadd.f32 0.0, %v1484
        %v1486 = vpop.f32.mrb[0].mxu0
        %1487 = vmatprep.mubr.f32.mxu0 0.0
        %1488 = vmatmul.mubr.f32.gmra.mrb[0].mxu0 %v1346
        %v1489 = vpop.f32.mrb[0].mxu0
        %v1490 = vadd.f32 0.0, %v1489
        %v1491 = vpop.f32.mrb[0].mxu0
        %1492 = vdwg.mxu0
        %vm1493 = vcmp.gt.f32.partialorder %v1415, 0.0
        %vm1494 = vcmp.gt.f32.partialorder %v1420, 0.0
        %vm1495 = vcmp.gt.f32.partialorder %v1425, 0.0
        %vm1496 = vcmp.gt.f32.partialorder %v1430, 0.0
        %vm1497 = vcmp.gt.f32.partialorder %v1435, 0.0
        %vm1498 = vcmp.gt.f32.partialorder %v1440, 0.0
        %vm1499 = vcmp.gt.f32.partialorder %v1445, 0.0
        %vm1500 = vcmp.gt.f32.partialorder %v1450, 0.0
        %vm1501 = vcmp.gt.f32.partialorder %v1455, 0.0
        %vm1502 = vcmp.gt.f32.partialorder %v1460, 0.0
        %vm1503 = vcmp.gt.f32.partialorder %v1465, 0.0
        %vm1504 = vcmp.gt.f32.partialorder %v1470, 0.0
        %vm1505 = vcmp.gt.f32.partialorder %v1475, 0.0
        %vm1506 = vcmp.gt.f32.partialorder %v1480, 0.0
        %vm1507 = vcmp.gt.f32.partialorder %v1485, 0.0
        %vm1508 = vcmp.gt.f32.partialorder %v1490, 0.0
        %v1509 = vmul.f32 %v1415, 0.2
        %v1510 = vmul.f32 %v1420, 0.2
        %v1511 = vmul.f32 %v1425, 0.2
        %v1512 = vmul.f32 %v1430, 0.2
        %v1513 = vmul.f32 %v1435, 0.2
        %v1514 = vmul.f32 %v1440, 0.2
        %v1515 = vmul.f32 %v1445, 0.2
        %v1516 = vmul.f32 %v1450, 0.2
        %v1517 = vmul.f32 %v1455, 0.2
        %v1518 = vmul.f32 %v1460, 0.2
        %v1519 = vmul.f32 %v1465, 0.2
        %v1520 = vmul.f32 %v1470, 0.2
        %v1521 = vmul.f32 %v1475, 0.2
        %v1522 = vmul.f32 %v1480, 0.2
        %v1523 = vmul.f32 %v1485, 0.2
        %v1524 = vmul.f32 %v1490, 0.2
        %v1525 = vsel %vm1493, %v1415, %v1509
        %v1526 = vsel %vm1494, %v1420, %v1510
        %v1527 = vsel %vm1495, %v1425, %v1511
        %v1528 = vsel %vm1496, %v1430, %v1512
        %v1529 = vsel %vm1497, %v1435, %v1513
        %v1530 = vsel %vm1498, %v1440, %v1514
        %v1531 = vsel %vm1499, %v1445, %v1515
        %v1532 = vsel %vm1500, %v1450, %v1516
        %v1533 = vsel %vm1501, %v1455, %v1517
        %v1534 = vsel %vm1502, %v1460, %v1518
        %v1535 = vsel %vm1503, %v1465, %v1519
        %v1536 = vsel %vm1504, %v1470, %v1520
        %v1537 = vsel %vm1505, %v1475, %v1521
        %v1538 = vsel %vm1506, %v1480, %v1522
        %v1539 = vsel %vm1507, %v1485, %v1523
        %v1540 = vsel %vm1508, %v1490, %v1524
        %v1541 = vadd.s32 %v665, 16
        %v1542 = vadd.s32 %v665, 24
        %v1543 = vadd.s32 %v665, 32
        %v1544 = vadd.s32 %v665, 40
        %v1545 = vadd.s32 %v665, 48
        %v1546 = vadd.s32 %v665, 56
        %v1547 = vadd.s32 %v665, 64
        %v1548 = vadd.s32 %v665, 72
        %v1549 = vadd.s32 %v665, 80
        %v1550 = vadd.s32 %v665, 88
        %v1551 = vadd.s32 %v665, 96
        %v1552 = vadd.s32 %v665, 104
        %v1553 = vadd.s32 %v665, 112
        %v1554 = vadd.s32 %v665, 120
        %s1555 = smul.u32 %s28, 128
        %v1556 = vstv %s1555
        %v1557 = vadd.s32 %v665, %v1556
        %v1558 = vadd.s32 %v666, %v1556
        %v1559 = vadd.s32 %v1541, %v1556
        %v1560 = vadd.s32 %v1542, %v1556
        %v1561 = vadd.s32 %v1543, %v1556
        %v1562 = vadd.s32 %v1544, %v1556
        %v1563 = vadd.s32 %v1545, %v1556
        %v1564 = vadd.s32 %v1546, %v1556
        %v1565 = vadd.s32 %v1547, %v1556
        %v1566 = vadd.s32 %v1548, %v1556
        %v1567 = vadd.s32 %v1549, %v1556
        %v1568 = vadd.s32 %v1550, %v1556
        %v1569 = vadd.s32 %v1551, %v1556
        %v1570 = vadd.s32 %v1552, %v1556
        %v1571 = vadd.s32 %v1553, %v1556
        %v1572 = vadd.s32 %v1554, %v1556
        %vm1573 = vcmp.lt.s32.totalorder %v1557, 300
        %vm1574 = vcmp.lt.s32.totalorder %v1558, 300
        %vm1575 = vcmp.lt.s32.totalorder %v1559, 300
        %vm1576 = vcmp.lt.s32.totalorder %v1560, 300
        %vm1577 = vcmp.lt.s32.totalorder %v1561, 300
        %vm1578 = vcmp.lt.s32.totalorder %v1562, 300
        %vm1579 = vcmp.lt.s32.totalorder %v1563, 300
        %vm1580 = vcmp.lt.s32.totalorder %v1564, 300
        %vm1581 = vcmp.lt.s32.totalorder %v1565, 300
        %vm1582 = vcmp.lt.s32.totalorder %v1566, 300
        %vm1583 = vcmp.lt.s32.totalorder %v1567, 300
        %vm1584 = vcmp.lt.s32.totalorder %v1568, 300
        %vm1585 = vcmp.lt.s32.totalorder %v1569, 300
        %vm1586 = vcmp.lt.s32.totalorder %v1570, 300
        %vm1587 = vcmp.lt.s32.totalorder %v1571, 300
        %vm1588 = vcmp.lt.s32.totalorder %v1572, 300
        %v1589 = vsel %vm1573, %v1525, -1e+30
        %v1590 = vsel %vm1574, %v1526, -1e+30
        %v1591 = vsel %vm1575, %v1527, -1e+30
        %v1592 = vsel %vm1576, %v1528, -1e+30
        %v1593 = vsel %vm1577, %v1529, -1e+30
        %v1594 = vsel %vm1578, %v1530, -1e+30
        %v1595 = vsel %vm1579, %v1531, -1e+30
        %v1596 = vsel %vm1580, %v1532, -1e+30
        %v1597 = vsel %vm1581, %v1533, -1e+30
        %v1598 = vsel %vm1582, %v1534, -1e+30
        %v1599 = vsel %vm1583, %v1535, -1e+30
        %v1600 = vsel %vm1584, %v1536, -1e+30
        %v1601 = vsel %vm1585, %v1537, -1e+30
        %v1602 = vsel %vm1586, %v1538, -1e+30
        %v1603 = vsel %vm1587, %v1539, -1e+30
        %v1604 = vsel %vm1588, %v1540, -1e+30
        %p1605 = scmp.eq.s32.totalorder %s27, 0
        %p1606 = scmp.eq.s32.totalorder %s28, 0
        %p1607 = pnand %p1605, %p1606
        %p1608 = pneg %p1607
        // Predicated region
        $region57: #{tpu_custom_call.1} parent=55 // pred_check
          _
        $region58: #{tpu_custom_call.1} parent=55 // pred_check_branch
          %1610 = sbr.rel (%p1607) target = $region60
        $region59: #{tpu_custom_call.1} parent=55 // pred_region
          %vm1611 = vcmask 31744
          %1612 = vst.msk [vmem:[#allocation2] sm:$0xff] %vm1611, 0.0
          %1613 = vst.msk [vmem:[#allocation2 + $0x8] sm:$0xff] %vm1611, 0.0
          %vm1614 = vcmask 0
          %1615 = vst.msk [vmem:[#allocation3] sm:$0x1] %vm1614, -1e+30
        $region60: #{tpu_custom_call.1} parent=55 // pred_fallthru
          _
        // Predicated region
        $region61: #{tpu_custom_call.1} parent=55 // pred_check
          %p1616 = pneg %p1605
        $region62: #{tpu_custom_call.1} parent=55 // pred_check_branch
          %1618 = sbr.rel (%p1616) target = $region64
        $region63: #{tpu_custom_call.1} parent=55 // pred_region
          %v1619 = vld [vmem:[#allocation3] sm:$0x1]
          %vm1620 = vcmask 31744
          %v1621 = vsel %vm1620, %v1589, -inf
          %v1622 = vsel %vm1620, %v1590, -inf
          %v1623 = vsel %vm1620, %v1591, -inf
          %v1624 = vsel %vm1620, %v1592, -inf
          %v1625 = vsel %vm1620, %v1593, -inf
          %v1626 = vmax.f32 %v1621, %v1625
          %v1627 = vsel %vm1620, %v1594, -inf
          %v1628 = vmax.f32 %v1622, %v1627
          %v1629 = vsel %vm1620, %v1595, -inf
          %v1630 = vmax.f32 %v1623, %v1629
          %v1631 = vsel %vm1620, %v1596, -inf
          %v1632 = vmax.f32 %v1624, %v1631
          %v1633 = vsel %vm1620, %v1597, -inf
          %v1634 = vmax.f32 %v1626, %v1633
          %v1635 = vsel %vm1620, %v1598, -inf
          %v1636 = vmax.f32 %v1628, %v1635
          %v1637 = vsel %vm1620, %v1599, -inf
          %v1638 = vmax.f32 %v1630, %v1637
          %v1639 = vsel %vm1620, %v1600, -inf
          %v1640 = vmax.f32 %v1632, %v1639
          %v1641 = vsel %vm1620, %v1601, -inf
          %v1642 = vmax.f32 %v1634, %v1641
          %v1643 = vsel %vm1620, %v1602, -inf
          %v1644 = vmax.f32 %v1636, %v1643
          %v1645 = vsel %vm1620, %v1603, -inf
          %v1646 = vmax.f32 %v1638, %v1645
          %v1647 = vsel %vm1620, %v1604, -inf
          %v1648 = vmax.f32 %v1640, %v1647
          %v1649 = vmax.f32 %v1642, %v1644
          %v1650 = vmax.f32 %v1646, %v1648
          %v1651 = vmax.f32 %v1649, %v1650
          %1652 = vmax.xlane.f32.xlu0 %v1651
          %v1653 = vpop.xlane.xlu0 %1652
          %v1654 = vrot.slane %v1653, 4
          %v1655 = vmax.f32 %v1653, %v1654
          %v1656 = vrot.slane %v1655, 2
          %v1657 = vmax.f32 %v1655, %v1656
          %v1658 = vrot.slane %v1657, 1
          %v1659 = vmax.f32 %v1657, %v1658
          %s1660 = vtos %v1659
          %v1661 = vstv %s1660
          %v1662 = vmax.f32 %v1619, %v1661
          %v1664 = vlaneseq
          %v1665 = vshrl.u32 %v1664, 7
          %v1666 = vsub.s32 0, %v1665
          %v1667 = vrot.slane %v1662, %v1666
          %1668 = vset.pattern.permute.xlu0 0
          %1669 = vperm.xlu0 %1668, %v1667
          %v1670 = vpop.permute.xlu0 %1669
          %v1672 = vsub.f32 %v1589, %v1670
          %v1673 = vsub.f32 %v1590, %v1670
          %v1674 = vsub.f32 %v1591, %v1670
          %v1675 = vsub.f32 %v1592, %v1670
          %v1676 = vsub.f32 %v1593, %v1670
          %v1677 = vsub.f32 %v1594, %v1670
          %v1678 = vsub.f32 %v1595, %v1670
          %v1679 = vsub.f32 %v1596, %v1670
          %v1680 = vsub.f32 %v1597, %v1670
          %v1681 = vsub.f32 %v1598, %v1670
          %v1682 = vsub.f32 %v1599, %v1670
          %v1683 = vsub.f32 %v1600, %v1670
          %v1684 = vsub.f32 %v1601, %v1670
          %v1685 = vsub.f32 %v1602, %v1670
          %v1686 = vsub.f32 %v1603, %v1670
          %v1687 = vsub.f32 %v1604, %v1670
          %v1688 = vmul.f32 %v1672, 1.442695
          %v1689 = vpow.pop %v1688
          %v1690 = vmul.f32 %v1673, 1.442695
          %v1691 = vpow.pop %v1690
          %v1692 = vmul.f32 %v1674, 1.442695
          %v1693 = vpow.pop %v1692
          %v1694 = vmul.f32 %v1675, 1.442695
          %v1695 = vpow.pop %v1694
          %v1696 = vmul.f32 %v1676, 1.442695
          %v1697 = vpow.pop %v1696
          %v1698 = vmul.f32 %v1677, 1.442695
          %v1699 = vpow.pop %v1698
          %v1700 = vmul.f32 %v1678, 1.442695
          %v1701 = vpow.pop %v1700
          %v1702 = vmul.f32 %v1679, 1.442695
          %v1703 = vpow.pop %v1702
          %v1704 = vmul.f32 %v1680, 1.442695
          %v1705 = vpow.pop %v1704
          %v1706 = vmul.f32 %v1681, 1.442695
          %v1707 = vpow.pop %v1706
          %v1708 = vmul.f32 %v1682, 1.442695
          %v1709 = vpow.pop %v1708
          %v1710 = vmul.f32 %v1683, 1.442695
          %v1711 = vpow.pop %v1710
          %v1712 = vmul.f32 %v1684, 1.442695
          %v1713 = vpow.pop %v1712
          %v1714 = vmul.f32 %v1685, 1.442695
          %v1715 = vpow.pop %v1714
          %v1716 = vmul.f32 %v1686, 1.442695
          %v1717 = vpow.pop %v1716
          %v1718 = vmul.f32 %v1687, 1.442695
          %v1719 = vpow.pop %v1718
          %v1720 = vsub.f32 %v1619, %v1662
          %v1721 = vmul.f32 %v1720, 1.442695
          %v1722 = vpow.pop %v1721
          %v1723 = vld [vmem:[#allocation2] sm:$0xff]
          %v1724 = vld [vmem:[#allocation2 + $0x8] sm:$0xff]
          %v1726 = vlaneseq
          %v1727 = vshrl.u32 %v1726, 7
          %v1728 = vsub.s32 0, %v1727
          %v1729 = vrot.slane %v1722, %v1728
          %1730 = vset.pattern.permute.xlu0 0
          %1731 = vperm.xlu0 %1730, %v1729
          %v1732 = vpop.permute.xlu0 %1731
          %v1734 = vmul.f32 %v1732, %v1723
          %v1735 = vmul.f32 %v1732, %v1724
          %1736 = vmatprep.subr.mxu0 0.0
          %1737 = vmatpush1.msra.mxu0 %v1689
          %1738 = vmatprep.subr.mxu0 0.0
          %1739 = vmatpush1.msra.mxu0 %v1691
          %1740 = vmatprep.subr.mxu0 0.0
          %1741 = vmatpush1.msra.mxu0 %v1693
          %1742 = vmatprep.subr.mxu0 0.0
          %1743 = vmatpush1.msra.mxu0 %v1695
          %1744 = vmatprep.subr.mxu0 0.0
          %1745 = vmatpush1.msra.mxu0 %v1697
          %1746 = vmatprep.subr.mxu0 0.0
          %1747 = vmatpush1.msra.mxu0 %v1699
          %1748 = vmatprep.subr.mxu0 0.0
          %1749 = vmatpush1.msra.mxu0 %v1701
          %1750 = vmatprep.subr.mxu0 0.0
          %1751 = vmatpush1.msra.mxu0 %v1703
          %1752 = vmatprep.subr.mxu0 0.0
          %1753 = vmatpush1.msra.mxu0 %v1705
          %1754 = vmatprep.subr.mxu0 0.0
          %1755 = vmatpush1.msra.mxu0 %v1707
          %1756 = vmatprep.subr.mxu0 0.0
          %1757 = vmatpush1.msra.mxu0 %v1709
          %1758 = vmatprep.subr.mxu0 0.0
          %1759 = vmatpush1.msra.mxu0 %v1711
          %1760 = vmatprep.subr.mxu0 0.0
          %1761 = vmatpush1.msra.mxu0 %v1713
          %1762 = vmatprep.subr.mxu0 0.0
          %1763 = vmatpush1.msra.mxu0 %v1715
          %1764 = vmatprep.subr.mxu0 0.0
          %1765 = vmatpush1.msra.mxu0 %v1717
          %1766 = vmatprep.subr.mxu0 0.0
          %1767 = vmatpush1.msra.mxu0 %v1719
          %1768 = vmatprep.subr.mxu0 0.0
          %1769 = vmatpush1.msra.mxu0 0.0
          %1770 = vmatprep.subr.mxu0 0.0
          %1771 = vmatpush1.msra.mxu0 0.0
          %1772 = vmatprep.subr.mxu0 0.0
          %1773 = vmatpush1.msra.mxu0 0.0
          %1774 = vmatprep.subr.mxu0 0.0
          %1775 = vmatpush1.msra.mxu0 0.0
          %1776 = vmatprep.subr.mxu0 0.0
          %1777 = vmatpush1.msra.mxu0 0.0
          %1778 = vmatprep.subr.mxu0 0.0
          %1779 = vmatpush1.msra.mxu0 0.0
          %1780 = vmatprep.subr.mxu0 0.0
          %1781 = vmatpush1.msra.mxu0 0.0
          %1782 = vmatprep.subr.mxu0 0.0
          %1783 = vmatpush1.msra.mxu0 0.0
          %1784 = vmatprep.subr.mxu0 0.0
          %1785 = vmatpush1.msra.mxu0 0.0
          %1786 = vmatprep.subr.mxu0 0.0
          %1787 = vmatpush1.msra.mxu0 0.0
          %1788 = vmatprep.subr.mxu0 0.0
          %1789 = vmatpush1.msra.mxu0 0.0
          %1790 = vmatprep.subr.mxu0 0.0
          %1791 = vmatpush1.msra.mxu0 0.0
          %1792 = vmatprep.subr.mxu0 0.0
          %1793 = vmatpush1.msra.mxu0 0.0
          %1794 = vmatprep.subr.mxu0 0.0
          %1795 = vmatpush1.msra.mxu0 0.0
          %1796 = vmatprep.subr.mxu0 0.0
          %1797 = vmatpush1.msra.mxu0 0.0
          %1798 = vmatprep.subr.mxu0 0.0
          %1799 = vmatpush1.msra.mxu0 0.0
          %1800 = vmatprep.mubr.f32.mxu0 0.0
          %1801 = vmatmul.mubr.f32.gmra.mrb[0].mxu0 %v675
          %v1802 = vpop.f32.mrb[0].mxu0
          %v1803 = vadd.f32 0.0, %v1802
          %v1804 = vpop.f32.mrb[0].mxu0
          %1805 = vmatprep.mubr.f32.mxu0 0.0
          %1806 = vmatmul.mubr.f32.gmra.mrb[0].mxu0 %v676
          %v1807 = vpop.f32.mrb[0].mxu0
          %v1808 = vadd.f32 0.0, %v1807
          %v1809 = vpop.f32.mrb[0].mxu0
          %1810 = vdwg.mxu0
          %v1811 = vadd.f32 %v1734, %v1803
          %v1812 = vadd.f32 %v1735, %v1808
          %1813 = vst.msk [vmem:[#allocation2] sm:$0xff] %vm1620, %v1811
          %1814 = vst.msk [vmem:[#allocation2 + $0x8] sm:$0xff] %vm1620, %v1812
          %vm1815 = vcmask 0
          %1816 = vst.msk [vmem:[#allocation3] sm:$0x1] %vm1815, %v1662
        $region64: #{tpu_custom_call.1} parent=55 // pred_fallthru
          _
        %p1817 = scmp.eq.s32.totalorder %s27, 1
        %p1818 = pnand %p1817, %p1606
        %p1819 = pneg %p1818
        // Predicated region
        $region65: #{tpu_custom_call.1} parent=55 // pred_check
          _
        $region66: #{tpu_custom_call.1} parent=55 // pred_check_branch
          %1821 = sbr.rel (%p1818) target = $region68
        $region67: #{tpu_custom_call.1} parent=55 // pred_region
          %1822 = vst.msk [vmem:[#allocation4] sm:$0xff] %vm1299, 0.0
          %1823 = vst.msk [vmem:[#allocation4 + $0x8] sm:$0xff] %vm1299, 0.0
        $region68: #{tpu_custom_call.1} parent=55 // pred_fallthru
          _
        // Predicated region
        $region69: #{tpu_custom_call.1} parent=55 // pred_check
          %p1824 = pneg %p1817
        $region70: #{tpu_custom_call.1} parent=55 // pred_check_branch
          %1826 = sbr.rel (%p1824) target = $region72
        $region71: #{tpu_custom_call.1} parent=55 // pred_region
          %v1827 = vld [vmem:[#allocation3] sm:$0x1]
          %v1829 = vlaneseq
          %v1830 = vshrl.u32 %v1829, 7
          %v1831 = vsub.s32 0, %v1830
          %v1832 = vrot.slane %v1827, %v1831
          %1833 = vset.pattern.permute.xlu0 0
          %1834 = vperm.xlu0 %1833, %v1832
          %v1835 = vpop.permute.xlu0 %1834
          %v1837 = vsub.f32 %v1589, %v1835
          %v1838 = vsub.f32 %v1590, %v1835
          %v1839 = vsub.f32 %v1591, %v1835
          %v1840 = vsub.f32 %v1592, %v1835
          %v1841 = vsub.f32 %v1593, %v1835
          %v1842 = vsub.f32 %v1594, %v1835
          %v1843 = vsub.f32 %v1595, %v1835
          %v1844 = vsub.f32 %v1596, %v1835
          %v1845 = vsub.f32 %v1597, %v1835
          %v1846 = vsub.f32 %v1598, %v1835
          %v1847 = vsub.f32 %v1599, %v1835
          %v1848 = vsub.f32 %v1600, %v1835
          %v1849 = vsub.f32 %v1601, %v1835
          %v1850 = vsub.f32 %v1602, %v1835
          %v1851 = vsub.f32 %v1603, %v1835
          %v1852 = vsub.f32 %v1604, %v1835
          %v1853 = vmul.f32 %v1837, 1.442695
          %v1854 = vpow.pop %v1853
          %v1855 = vmul.f32 %v1838, 1.442695
          %v1856 = vpow.pop %v1855
          %v1857 = vmul.f32 %v1839, 1.442695
          %v1858 = vpow.pop %v1857
          %v1859 = vmul.f32 %v1840, 1.442695
          %v1860 = vpow.pop %v1859
          %v1861 = vmul.f32 %v1841, 1.442695
          %v1862 = vpow.pop %v1861
          %v1863 = vmul.f32 %v1842, 1.442695
          %v1864 = vpow.pop %v1863
          %v1865 = vmul.f32 %v1843, 1.442695
          %v1866 = vpow.pop %v1865
          %v1867 = vmul.f32 %v1844, 1.442695
          %v1868 = vpow.pop %v1867
          %v1869 = vmul.f32 %v1845, 1.442695
          %v1870 = vpow.pop %v1869
          %v1871 = vmul.f32 %v1846, 1.442695
          %v1872 = vpow.pop %v1871
          %v1873 = vmul.f32 %v1847, 1.442695
          %v1874 = vpow.pop %v1873
          %v1875 = vmul.f32 %v1848, 1.442695
          %v1876 = vpow.pop %v1875
          %v1877 = vmul.f32 %v1849, 1.442695
          %v1878 = vpow.pop %v1877
          %v1879 = vmul.f32 %v1850, 1.442695
          %v1880 = vpow.pop %v1879
          %v1881 = vmul.f32 %v1851, 1.442695
          %v1882 = vpow.pop %v1881
          %v1883 = vmul.f32 %v1852, 1.442695
          %v1884 = vpow.pop %v1883
          %v1885 = vld [vmem:[#allocation2] sm:$0xff]
          %v1886 = vld [vmem:[#allocation2 + $0x8] sm:$0xff]
          %1887 = vmatprep.subr.mxu0 0.0
          %1888 = vmatpush1.msra.mxu0 %v1885
          %1889 = vmatprep.subr.mxu0 0.0
          %1890 = vmatpush1.msra.mxu0 %v1886
          %1891 = vmatprep.subr.mxu0 0.0
          %1892 = vmatpush1.msra.mxu0 0.0
          %1893 = vmatprep.subr.mxu0 0.0
          %1894 = vmatpush1.msra.mxu0 0.0
          %1895 = vmatprep.subr.mxu0 0.0
          %1896 = vmatpush1.msra.mxu0 0.0
          %1897 = vmatprep.subr.mxu0 0.0
          %1898 = vmatpush1.msra.mxu0 0.0
          %1899 = vmatprep.subr.mxu0 0.0
          %1900 = vmatpush1.msra.mxu0 0.0
          %1901 = vmatprep.subr.mxu0 0.0
          %1902 = vmatpush1.msra.mxu0 0.0
          %1903 = vmatprep.subr.mxu0 0.0
          %1904 = vmatpush1.msra.mxu0 0.0
          %1905 = vmatprep.subr.mxu0 0.0
          %1906 = vmatpush1.msra.mxu0 0.0
          %1907 = vmatprep.subr.mxu0 0.0
          %1908 = vmatpush1.msra.mxu0 0.0
          %1909 = vmatprep.subr.mxu0 0.0
          %1910 = vmatpush1.msra.mxu0 0.0
          %1911 = vmatprep.subr.mxu0 0.0
          %1912 = vmatpush1.msra.mxu0 0.0
          %1913 = vmatprep.subr.mxu0 0.0
          %1914 = vmatpush1.msra.mxu0 0.0
          %1915 = vmatprep.subr.mxu0 0.0
          %1916 = vmatpush1.msra.mxu0 0.0
          %1917 = vmatprep.subr.mxu0 0.0
          %1918 = vmatpush1.msra.mxu0 0.0
          %1919 = vmatprep.subr.mxu0 0.0
          %1920 = vmatpush1.msra.mxu0 0.0
          %1921 = vmatprep.subr.mxu0 0.0
          %1922 = vmatpush1.msra.mxu0 0.0
          %1923 = vmatprep.subr.mxu0 0.0
          %1924 = vmatpush1.msra.mxu0 0.0
          %1925 = vmatprep.subr.mxu0 0.0
          %1926 = vmatpush1.msra.mxu0 0.0
          %1927 = vmatprep.subr.mxu0 0.0
          %1928 = vmatpush1.msra.mxu0 0.0
          %1929 = vmatprep.subr.mxu0 0.0
          %1930 = vmatpush1.msra.mxu0 0.0
          %1931 = vmatprep.subr.mxu0 0.0
          %1932 = vmatpush1.msra.mxu0 0.0
          %1933 = vmatprep.subr.mxu0 0.0
          %1934 = vmatpush1.msra.mxu0 0.0
          %1935 = vmatprep.subr.mxu0 0.0
          %1936 = vmatpush1.msra.mxu0 0.0
          %1937 = vmatprep.subr.mxu0 0.0
          %1938 = vmatpush1.msra.mxu0 0.0
          %1939 = vmatprep.subr.mxu0 0.0
          %1940 = vmatpush1.msra.mxu0 0.0
          %1941 = vmatprep.subr.mxu0 0.0
          %1942 = vmatpush1.msra.mxu0 0.0
          %1943 = vmatprep.subr.mxu0 0.0
          %1944 = vmatpush1.msra.mxu0 0.0
          %1945 = vmatprep.subr.mxu0 0.0
          %1946 = vmatpush1.msra.mxu0 0.0
          %1947 = vmatprep.subr.mxu0 0.0
          %1948 = vmatpush1.msra.mxu0 0.0
          %1949 = vmatprep.subr.mxu0 0.0
          %1950 = vmatpush1.msra.mxu0 0.0
          %1951 = vmatprep.mubr.f32.mxu0 0.0
          %1952 = vmatmul.mubr.f32.gmra.mrb[0].mxu0 %v683
          %v1953 = vpop.f32.mrb[0].mxu0
          %v1954 = vadd.f32 1e-12, %v1953
          %v1955 = vpop.f32.mrb[0].mxu0
          %1956 = vmatprep.mubr.f32.mxu0 0.0
          %1957 = vmatmul.mubr.f32.gmra.mrb[0].mxu0 %v686
          %v1958 = vpop.f32.mrb[0].mxu0
          %v1959 = vadd.f32 1e-12, %v1958
          %v1960 = vpop.f32.mrb[0].mxu0
          %1961 = vmatprep.mubr.f32.mxu0 0.0
          %1962 = vmatmul.mubr.f32.gmra.mrb[0].mxu0 %v689
          %v1963 = vpop.f32.mrb[0].mxu0
          %v1964 = vadd.f32 1e-12, %v1963
          %v1965 = vpop.f32.mrb[0].mxu0
          %1966 = vmatprep.mubr.f32.mxu0 0.0
          %1967 = vmatmul.mubr.f32.gmra.mrb[0].mxu0 %v692
          %v1968 = vpop.f32.mrb[0].mxu0
          %v1969 = vadd.f32 1e-12, %v1968
          %v1970 = vpop.f32.mrb[0].mxu0
          %1971 = vmatprep.mubr.f32.mxu0 0.0
          %1972 = vmatmul.mubr.f32.gmra.mrb[0].mxu0 %v695
          %v1973 = vpop.f32.mrb[0].mxu0
          %v1974 = vadd.f32 1e-12, %v1973
          %v1975 = vpop.f32.mrb[0].mxu0
          %1976 = vmatprep.mubr.f32.mxu0 0.0
          %1977 = vmatmul.mubr.f32.gmra.mrb[0].mxu0 %v698
          %v1978 = vpop.f32.mrb[0].mxu0
          %v1979 = vadd.f32 1e-12, %v1978
          %v1980 = vpop.f32.mrb[0].mxu0
          %1981 = vmatprep.mubr.f32.mxu0 0.0
          %1982 = vmatmul.mubr.f32.gmra.mrb[0].mxu0 %v701
          %v1983 = vpop.f32.mrb[0].mxu0
          %v1984 = vadd.f32 1e-12, %v1983
          %v1985 = vpop.f32.mrb[0].mxu0
          %1986 = vmatprep.mubr.f32.mxu0 0.0
          %1987 = vmatmul.mubr.f32.gmra.mrb[0].mxu0 %v704
          %v1988 = vpop.f32.mrb[0].mxu0
          %v1989 = vadd.f32 1e-12, %v1988
          %v1990 = vpop.f32.mrb[0].mxu0
          %1991 = vmatprep.mubr.f32.mxu0 0.0
          %1992 = vmatmul.mubr.f32.gmra.mrb[0].mxu0 %v707
          %v1993 = vpop.f32.mrb[0].mxu0
          %v1994 = vadd.f32 1e-12, %v1993
          %v1995 = vpop.f32.mrb[0].mxu0
          %1996 = vmatprep.mubr.f32.mxu0 0.0
          %1997 = vmatmul.mubr.f32.gmra.mrb[0].mxu0 %v710
          %v1998 = vpop.f32.mrb[0].mxu0
          %v1999 = vadd.f32 1e-12, %v1998
          %v2000 = vpop.f32.mrb[0].mxu0
          %2001 = vmatprep.mubr.f32.mxu0 0.0
          %2002 = vmatmul.mubr.f32.gmra.mrb[0].mxu0 %v713
          %v2003 = vpop.f32.mrb[0].mxu0
          %v2004 = vadd.f32 1e-12, %v2003
          %v2005 = vpop.f32.mrb[0].mxu0
          %2006 = vmatprep.mubr.f32.mxu0 0.0
          %2007 = vmatmul.mubr.f32.gmra.mrb[0].mxu0 %v716
          %v2008 = vpop.f32.mrb[0].mxu0
          %v2009 = vadd.f32 1e-12, %v2008
          %v2010 = vpop.f32.mrb[0].mxu0
          %2011 = vmatprep.mubr.f32.mxu0 0.0
          %2012 = vmatmul.mubr.f32.gmra.mrb[0].mxu0 %v719
          %v2013 = vpop.f32.mrb[0].mxu0
          %v2014 = vadd.f32 1e-12, %v2013
          %v2015 = vpop.f32.mrb[0].mxu0
          %2016 = vmatprep.mubr.f32.mxu0 0.0
          %2017 = vmatmul.mubr.f32.gmra.mrb[0].mxu0 %v722
          %v2018 = vpop.f32.mrb[0].mxu0
          %v2019 = vadd.f32 1e-12, %v2018
          %v2020 = vpop.f32.mrb[0].mxu0
          %2021 = vmatprep.mubr.f32.mxu0 0.0
          %2022 = vmatmul.mubr.f32.gmra.mrb[0].mxu0 %v725
          %v2023 = vpop.f32.mrb[0].mxu0
          %v2024 = vadd.f32 1e-12, %v2023
          %v2025 = vpop.f32.mrb[0].mxu0
          %2026 = vmatprep.mubr.f32.mxu0 0.0
          %2027 = vmatmul.mubr.f32.gmra.mrb[0].mxu0 %v728
          %v2028 = vpop.f32.mrb[0].mxu0
          %v2029 = vadd.f32 1e-12, %v2028
          %v2030 = vpop.f32.mrb[0].mxu0
          %2031 = vdwg.mxu0
          %v2032 = vrcp.pop %v1954
          %v2033 = vmul.f32 %v1854, %v2032
          %v2034 = vrcp.pop %v1959
          %v2035 = vmul.f32 %v1856, %v2034
          %v2036 = vrcp.pop %v1964
          %v2037 = vmul.f32 %v1858, %v2036
          %v2038 = vrcp.pop %v1969
          %v2039 = vmul.f32 %v1860, %v2038
          %v2040 = vrcp.pop %v1974
          %v2041 = vmul.f32 %v1862, %v2040
          %v2042 = vrcp.pop %v1979
          %v2043 = vmul.f32 %v1864, %v2042
          %v2044 = vrcp.pop %v1984
          %v2045 = vmul.f32 %v1866, %v2044
          %v2046 = vrcp.pop %v1989
          %v2047 = vmul.f32 %v1868, %v2046
          %v2048 = vrcp.pop %v1994
          %v2049 = vmul.f32 %v1870, %v2048
          %v2050 = vrcp.pop %v1999
          %v2051 = vmul.f32 %v1872, %v2050
          %v2052 = vrcp.pop %v2004
          %v2053 = vmul.f32 %v1874, %v2052
          %v2054 = vrcp.pop %v2009
          %v2055 = vmul.f32 %v1876, %v2054
          %v2056 = vrcp.pop %v2014
          %v2057 = vmul.f32 %v1878, %v2056
          %v2058 = vrcp.pop %v2019
          %v2059 = vmul.f32 %v1880, %v2058
          %v2060 = vrcp.pop %v2024
          %v2061 = vmul.f32 %v1882, %v2060
          %v2062 = vrcp.pop %v2029
          %v2063 = vmul.f32 %v1884, %v2062
          %vm2064 = vcmask 31744
          %2065 = vst.msk [vmem:[%s434] sm:$0xff] %vm2064, %v2033
          %2066 = vst.msk [vmem:[%s434 + $0x8] sm:$0xff] %vm2064, %v2035
          %2067 = vst.msk [vmem:[%s434 + $0x10] sm:$0xff] %vm2064, %v2037
          %2068 = vst.msk [vmem:[%s434 + $0x18] sm:$0xff] %vm2064, %v2039
          %2069 = vst.msk [vmem:[%s434 + $0x20] sm:$0xff] %vm2064, %v2041
          %2070 = vst.msk [vmem:[%s434 + $0x28] sm:$0xff] %vm2064, %v2043
          %2071 = vst.msk [vmem:[%s434 + $0x30] sm:$0xff] %vm2064, %v2045
          %2072 = vst.msk [vmem:[%s434 + $0x38] sm:$0xff] %vm2064, %v2047
          %2073 = vst.msk [vmem:[%s434 + $0x40] sm:$0xff] %vm2064, %v2049
          %2074 = vst.msk [vmem:[%s434 + $0x48] sm:$0xff] %vm2064, %v2051
          %2075 = vst.msk [vmem:[%s434 + $0x50] sm:$0xff] %vm2064, %v2053
          %2076 = vst.msk [vmem:[%s434 + $0x58] sm:$0xff] %vm2064, %v2055
          %2077 = vst.msk [vmem:[%s434 + $0x60] sm:$0xff] %vm2064, %v2057
          %2078 = vst.msk [vmem:[%s434 + $0x68] sm:$0xff] %vm2064, %v2059
          %2079 = vst.msk [vmem:[%s434 + $0x70] sm:$0xff] %vm2064, %v2061
          %2080 = vst.msk [vmem:[%s434 + $0x78] sm:$0xff] %vm2064, %v2063
          %v2081 = vld [vmem:[%s8] sm:$0xf]
          %v2083 = vsel %vm2064, %v2033, 0
          %v2086 = vsel %vm2064, %v2035, 0
          %v2089 = vsel %vm2064, %v2037, 0
          %v2092 = vsel %vm2064, %v2039, 0
          %v2095 = vsel %vm2064, %v2041, 0
          %v2098 = vsel %vm2064, %v2043, 0
          %v2101 = vsel %vm2064, %v2045, 0
          %v2104 = vsel %vm2064, %v2047, 0
          %v2107 = vsel %vm2064, %v2049, 0
          %v2110 = vsel %vm2064, %v2051, 0
          %v2113 = vsel %vm2064, %v2053, 0
          %v2116 = vsel %vm2064, %v2055, 0
          %v2119 = vsel %vm2064, %v2057, 0
          %v2122 = vsel %vm2064, %v2059, 0
          %v2125 = vsel %vm2064, %v2061, 0
          %v2128 = vsel %vm2064, %v2063, 0
          %vm2130 = vcmask 1043456
          %v2132 = vsel %vm2130, %v2081, 0
          %2134 = vmatprep.subr.mxu0 0.0
          %2135 = vmatpush1.msra.mxu0 %v2132
          %2136 = vmatprep.subr.mxu0 0.0
          %2137 = vmatpush1.msra.mxu0 0.0
          %2138 = vmatprep.subr.mxu0 0.0
          %2139 = vmatpush1.msra.mxu0 0.0
          %2140 = vmatprep.subr.mxu0 0.0
          %2141 = vmatpush1.msra.mxu0 0.0
          %2142 = vmatprep.subr.mxu0 0.0
          %2143 = vmatpush1.msra.mxu0 0.0
          %2144 = vmatprep.subr.mxu0 0.0
          %2145 = vmatpush1.msra.mxu0 0.0
          %2146 = vmatprep.subr.mxu0 0.0
          %2147 = vmatpush1.msra.mxu0 0.0
          %2148 = vmatprep.subr.mxu0 0.0
          %2149 = vmatpush1.msra.mxu0 0.0
          %2150 = vmatprep.subr.mxu0 0.0
          %2151 = vmatpush1.msra.mxu0 0.0
          %2152 = vmatprep.subr.mxu0 0.0
          %2153 = vmatpush1.msra.mxu0 0.0
          %2154 = vmatprep.subr.mxu0 0.0
          %2155 = vmatpush1.msra.mxu0 0.0
          %2156 = vmatprep.subr.mxu0 0.0
          %2157 = vmatpush1.msra.mxu0 0.0
          %2158 = vmatprep.subr.mxu0 0.0
          %2159 = vmatpush1.msra.mxu0 0.0
          %2160 = vmatprep.subr.mxu0 0.0
          %2161 = vmatpush1.msra.mxu0 0.0
          %2162 = vmatprep.subr.mxu0 0.0
          %2163 = vmatpush1.msra.mxu0 0.0
          %2164 = vmatprep.subr.mxu0 0.0
          %2165 = vmatpush1.msra.mxu0 0.0
          %2166 = vmatprep.subr.mxu0 0.0
          %2167 = vmatpush1.msra.mxu0 0.0
          %2168 = vmatprep.subr.mxu0 0.0
          %2169 = vmatpush1.msra.mxu0 0.0
          %2170 = vmatprep.subr.mxu0 0.0
          %2171 = vmatpush1.msra.mxu0 0.0
          %2172 = vmatprep.subr.mxu0 0.0
          %2173 = vmatpush1.msra.mxu0 0.0
          %2174 = vmatprep.subr.mxu0 0.0
          %2175 = vmatpush1.msra.mxu0 0.0
          %2176 = vmatprep.subr.mxu0 0.0
          %2177 = vmatpush1.msra.mxu0 0.0
          %2178 = vmatprep.subr.mxu0 0.0
          %2179 = vmatpush1.msra.mxu0 0.0
          %2180 = vmatprep.subr.mxu0 0.0
          %2181 = vmatpush1.msra.mxu0 0.0
          %2182 = vmatprep.subr.mxu0 0.0
          %2183 = vmatpush1.msra.mxu0 0.0
          %2184 = vmatprep.subr.mxu0 0.0
          %2185 = vmatpush1.msra.mxu0 0.0
          %2186 = vmatprep.subr.mxu0 0.0
          %2187 = vmatpush1.msra.mxu0 0.0
          %2188 = vmatprep.subr.mxu0 0.0
          %2189 = vmatpush1.msra.mxu0 0.0
          %2190 = vmatprep.subr.mxu0 0.0
          %2191 = vmatpush1.msra.mxu0 0.0
          %2192 = vmatprep.subr.mxu0 0.0
          %2193 = vmatpush1.msra.mxu0 0.0
          %2194 = vmatprep.subr.mxu0 0.0
          %2195 = vmatpush1.msra.mxu0 0.0
          %2196 = vmatprep.subr.mxu0 0.0
          %2197 = vmatpush1.msra.mxu0 0.0
          %2198 = vmatprep.mubr.f32.mxu0 0.0
          %2199 = vmatmul.mubr.f32.gmra.mrb[0].mxu0 %v2083
          %v2200 = vpop.f32.mrb[0].mxu0
          %v2201 = vadd.f32 0.0, %v2200
          %v2202 = vpop.f32.mrb[0].mxu0
          %2203 = vmatprep.mubr.f32.mxu0 0.0
          %2204 = vmatmul.mubr.f32.gmra.mrb[0].mxu0 %v2086
          %v2205 = vpop.f32.mrb[0].mxu0
          %v2206 = vadd.f32 0.0, %v2205
          %v2207 = vpop.f32.mrb[0].mxu0
          %2208 = vmatprep.mubr.f32.mxu0 0.0
          %2209 = vmatmul.mubr.f32.gmra.mrb[0].mxu0 %v2089
          %v2210 = vpop.f32.mrb[0].mxu0
          %v2211 = vadd.f32 0.0, %v2210
          %v2212 = vpop.f32.mrb[0].mxu0
          %2213 = vmatprep.mubr.f32.mxu0 0.0
          %2214 = vmatmul.mubr.f32.gmra.mrb[0].mxu0 %v2092
          %v2215 = vpop.f32.mrb[0].mxu0
          %v2216 = vadd.f32 0.0, %v2215
          %v2217 = vpop.f32.mrb[0].mxu0
          %2218 = vmatprep.mubr.f32.mxu0 0.0
          %2219 = vmatmul.mubr.f32.gmra.mrb[0].mxu0 %v2095
          %v2220 = vpop.f32.mrb[0].mxu0
          %v2221 = vadd.f32 0.0, %v2220
          %v2222 = vpop.f32.mrb[0].mxu0
          %2223 = vmatprep.mubr.f32.mxu0 0.0
          %2224 = vmatmul.mubr.f32.gmra.mrb[0].mxu0 %v2098
          %v2225 = vpop.f32.mrb[0].mxu0
          %v2226 = vadd.f32 0.0, %v2225
          %v2227 = vpop.f32.mrb[0].mxu0
          %2228 = vmatprep.mubr.f32.mxu0 0.0
          %2229 = vmatmul.mubr.f32.gmra.mrb[0].mxu0 %v2101
          %v2230 = vpop.f32.mrb[0].mxu0
          %v2231 = vadd.f32 0.0, %v2230
          %v2232 = vpop.f32.mrb[0].mxu0
          %2233 = vmatprep.mubr.f32.mxu0 0.0
          %2234 = vmatmul.mubr.f32.gmra.mrb[0].mxu0 %v2104
          %v2235 = vpop.f32.mrb[0].mxu0
          %v2236 = vadd.f32 0.0, %v2235
          %v2237 = vpop.f32.mrb[0].mxu0
          %2238 = vmatprep.mubr.f32.mxu0 0.0
          %2239 = vmatmul.mubr.f32.gmra.mrb[0].mxu0 %v2107
          %v2240 = vpop.f32.mrb[0].mxu0
          %v2241 = vadd.f32 0.0, %v2240
          %v2242 = vpop.f32.mrb[0].mxu0
          %2243 = vmatprep.mubr.f32.mxu0 0.0
          %2244 = vmatmul.mubr.f32.gmra.mrb[0].mxu0 %v2110
          %v2245 = vpop.f32.mrb[0].mxu0
          %v2246 = vadd.f32 0.0, %v2245
          %v2247 = vpop.f32.mrb[0].mxu0
          %2248 = vmatprep.mubr.f32.mxu0 0.0
          %2249 = vmatmul.mubr.f32.gmra.mrb[0].mxu0 %v2113
          %v2250 = vpop.f32.mrb[0].mxu0
          %v2251 = vadd.f32 0.0, %v2250
          %v2252 = vpop.f32.mrb[0].mxu0
          %2253 = vmatprep.mubr.f32.mxu0 0.0
          %2254 = vmatmul.mubr.f32.gmra.mrb[0].mxu0 %v2116
          %v2255 = vpop.f32.mrb[0].mxu0
          %v2256 = vadd.f32 0.0, %v2255
          %v2257 = vpop.f32.mrb[0].mxu0
          %2258 = vmatprep.mubr.f32.mxu0 0.0
          %2259 = vmatmul.mubr.f32.gmra.mrb[0].mxu0 %v2119
          %v2260 = vpop.f32.mrb[0].mxu0
          %v2261 = vadd.f32 0.0, %v2260
          %v2262 = vpop.f32.mrb[0].mxu0
          %2263 = vmatprep.mubr.f32.mxu0 0.0
          %2264 = vmatmul.mubr.f32.gmra.mrb[0].mxu0 %v2122
          %v2265 = vpop.f32.mrb[0].mxu0
          %v2266 = vadd.f32 0.0, %v2265
          %v2267 = vpop.f32.mrb[0].mxu0
          %2268 = vmatprep.mubr.f32.mxu0 0.0
          %2269 = vmatmul.mubr.f32.gmra.mrb[0].mxu0 %v2125
          %v2270 = vpop.f32.mrb[0].mxu0
          %v2271 = vadd.f32 0.0, %v2270
          %v2272 = vpop.f32.mrb[0].mxu0
          %2273 = vmatprep.mubr.f32.mxu0 0.0
          %2274 = vmatmul.mubr.f32.gmra.mrb[0].mxu0 %v2128
          %v2275 = vpop.f32.mrb[0].mxu0
          %v2276 = vadd.f32 0.0, %v2275
          %v2277 = vpop.f32.mrb[0].mxu0
          %2278 = vdwg.mxu0
          %v2279 = vmul.f32 %v1279, %v2201
          %v2280 = vmul.f32 %v1280, %v2206
          %v2281 = vmul.f32 %v1281, %v2211
          %v2282 = vmul.f32 %v1282, %v2216
          %v2283 = vmul.f32 %v1283, %v2221
          %v2284 = vmul.f32 %v1284, %v2226
          %v2285 = vmul.f32 %v1285, %v2231
          %v2286 = vmul.f32 %v1286, %v2236
          %v2287 = vmul.f32 %v1287, %v2241
          %v2288 = vmul.f32 %v1288, %v2246
          %v2289 = vmul.f32 %v1289, %v2251
          %v2290 = vmul.f32 %v1290, %v2256
          %v2291 = vmul.f32 %v1291, %v2261
          %v2292 = vmul.f32 %v1292, %v2266
          %v2293 = vmul.f32 %v1293, %v2271
          %v2294 = vmul.f32 %v1294, %v2276
          %v2295 = vld [vmem:[#allocation4] sm:$0xff]
          %v2296 = vld [vmem:[#allocation4 + $0x8] sm:$0xff]
          %2297 = vmatprep.subr.mxu0 0.0
          %2298 = vmatpush1.msra.mxu0 %v2279
          %2299 = vmatprep.subr.mxu0 0.0
          %2300 = vmatpush1.msra.mxu0 %v2280
          %2301 = vmatprep.subr.mxu0 0.0
          %2302 = vmatpush1.msra.mxu0 %v2281
          %2303 = vmatprep.subr.mxu0 0.0
          %2304 = vmatpush1.msra.mxu0 %v2282
          %2305 = vmatprep.subr.mxu0 0.0
          %2306 = vmatpush1.msra.mxu0 %v2283
          %2307 = vmatprep.subr.mxu0 0.0
          %2308 = vmatpush1.msra.mxu0 %v2284
          %2309 = vmatprep.subr.mxu0 0.0
          %2310 = vmatpush1.msra.mxu0 %v2285
          %2311 = vmatprep.subr.mxu0 0.0
          %2312 = vmatpush1.msra.mxu0 %v2286
          %2313 = vmatprep.subr.mxu0 0.0
          %2314 = vmatpush1.msra.mxu0 %v2287
          %2315 = vmatprep.subr.mxu0 0.0
          %2316 = vmatpush1.msra.mxu0 %v2288
          %2317 = vmatprep.subr.mxu0 0.0
          %2318 = vmatpush1.msra.mxu0 %v2289
          %2319 = vmatprep.subr.mxu0 0.0
          %2320 = vmatpush1.msra.mxu0 %v2290
          %2321 = vmatprep.subr.mxu0 0.0
          %2322 = vmatpush1.msra.mxu0 %v2291
          %2323 = vmatprep.subr.mxu0 0.0
          %2324 = vmatpush1.msra.mxu0 %v2292
          %2325 = vmatprep.subr.mxu0 0.0
          %2326 = vmatpush1.msra.mxu0 %v2293
          %2327 = vmatprep.subr.mxu0 0.0
          %2328 = vmatpush1.msra.mxu0 %v2294
          %2329 = vmatprep.subr.mxu0 0.0
          %2330 = vmatpush1.msra.mxu0 0.0
          %2331 = vmatprep.subr.mxu0 0.0
          %2332 = vmatpush1.msra.mxu0 0.0
          %2333 = vmatprep.subr.mxu0 0.0
          %2334 = vmatpush1.msra.mxu0 0.0
          %2335 = vmatprep.subr.mxu0 0.0
          %2336 = vmatpush1.msra.mxu0 0.0
          %2337 = vmatprep.subr.mxu0 0.0
          %2338 = vmatpush1.msra.mxu0 0.0
          %2339 = vmatprep.subr.mxu0 0.0
          %2340 = vmatpush1.msra.mxu0 0.0
          %2341 = vmatprep.subr.mxu0 0.0
          %2342 = vmatpush1.msra.mxu0 0.0
          %2343 = vmatprep.subr.mxu0 0.0
          %2344 = vmatpush1.msra.mxu0 0.0
          %2345 = vmatprep.subr.mxu0 0.0
          %2346 = vmatpush1.msra.mxu0 0.0
          %2347 = vmatprep.subr.mxu0 0.0
          %2348 = vmatpush1.msra.mxu0 0.0
          %2349 = vmatprep.subr.mxu0 0.0
          %2350 = vmatpush1.msra.mxu0 0.0
          %2351 = vmatprep.subr.mxu0 0.0
          %2352 = vmatpush1.msra.mxu0 0.0
          %2353 = vmatprep.subr.mxu0 0.0
          %2354 = vmatpush1.msra.mxu0 0.0
          %2355 = vmatprep.subr.mxu0 0.0
          %2356 = vmatpush1.msra.mxu0 0.0
          %2357 = vmatprep.subr.mxu0 0.0
          %2358 = vmatpush1.msra.mxu0 0.0
          %2359 = vmatprep.subr.mxu0 0.0
          %2360 = vmatpush1.msra.mxu0 0.0
          %2361 = vmatprep.mubr.f32.mxu0 0.0
          %2362 = vmatmul.mubr.f32.gmra.mrb[0].mxu0 %v675
          %v2363 = vpop.f32.mrb[0].mxu0
          %v2364 = vadd.f32 0.0, %v2363
          %v2365 = vpop.f32.mrb[0].mxu0
          %2366 = vmatprep.mubr.f32.mxu0 0.0
          %2367 = vmatmul.mubr.f32.gmra.mrb[0].mxu0 %v676
          %v2368 = vpop.f32.mrb[0].mxu0
          %v2369 = vadd.f32 0.0, %v2368
          %v2370 = vpop.f32.mrb[0].mxu0
          %2371 = vdwg.mxu0
          %v2372 = vadd.f32 %v2295, %v2364
          %v2373 = vadd.f32 %v2296, %v2369
          %2374 = vst.msk [vmem:[#allocation4] sm:$0xff] %vm1299, %v2372
          %2375 = vst.msk [vmem:[#allocation4 + $0x8] sm:$0xff] %vm1299, %v2373
        $region72: #{tpu_custom_call.1} parent=55 // pred_fallthru
          _
        %s2376 = smul.u32 %s28, %s27
        %s2377 = smul.u32 16, %s2376
        %p2378 = scmp.lt.s32.totalorder %s2377, 47
        %s2379 = scalar_select %p2378, %s2377, 47
        %s2380 = smul.addr %s2379, 8
        %s2381 = scalar_lea.vmem %s10, %s2380
        // Predicated region
        $region73: #{tpu_custom_call.1} parent=55 // pred_check
          %p2382 = pneg %p257
        $region74: #{tpu_custom_call.1} parent=55 // pred_check_branch
          %2384 = sbr.rel (%p2382) target = $region76
        $region75: #{tpu_custom_call.1} parent=55 // pred_region
          %s2386 = ssub.s32 256, 256
          %2387 = vsyncadd [#allocation5], %s2386
          %s2388 = sshll.u32 [#allocation4], 4
          %s2389 = int_to_ptr.vmem [resolvable:$true] %s2388
          %2394 = dma.vmem_to_hbm [thread:$0]  %s2389, 256, %s9, [#allocation5], 128, 128, 8
        $region76: #{tpu_custom_call.1} parent=55 // pred_fallthru
          _
        // Predicated region
        $region77: #{tpu_custom_call.1} parent=55 // pred_check
          %p2395 = pneg %p285
        $region78: #{tpu_custom_call.1} parent=55 // pred_check_branch
          %2397 = sbr.rel (%p2395) target = $region80
        $region79: #{tpu_custom_call.1} parent=55 // pred_region
          %s2398 = smul.u32 %s28, %s27
          %s2399 = smul.u32 16, %s2398
        $region80: #{tpu_custom_call.1} parent=55 // pred_fallthru
          _
        // Predicated region
        $region81: #{tpu_custom_call.1} parent=55 // pred_check
          %p2400 = pneg %p257
        $region82: #{tpu_custom_call.1} parent=55 // pred_check_branch
          %2402 = sbr.rel (%p2400) target = $region84
        $region83: #{tpu_custom_call.1} parent=55 // pred_region
          %2403 = dma.done [#allocation5], 256
        $region84: #{tpu_custom_call.1} parent=55 // pred_fallthru
          _
      $region56: #{tpu_custom_call.1} parent=5 // pred_fallthru
        _
      %p2404 = scmp.le.s32.totalorder 2, %s18
      // Predicated region
      $region85: #{tpu_custom_call.1} parent=5 // pred_check
        %p2405 = pneg %p2404
      $region86: #{tpu_custom_call.1} parent=5 // pred_check_branch
        %2407 = sbr.rel (%p2405) target = $region88
      $region87: #{tpu_custom_call.1} parent=5 // pred_region
        %s2408 = ssub.s32 %s18, 2
        // Predicated region
        $region89: #{tpu_custom_call.1} parent=87 // pred_check
          %p2409 = pneg %p291
        $region90: #{tpu_custom_call.1} parent=87 // pred_check_branch
          %2411 = sbr.rel (%p2409) target = $region92
        $region91: #{tpu_custom_call.1} parent=87 // pred_region
          %s2412 = smul.u32 %s30, %s29
          %s2413 = smul.u32 16, %s2412
          %p2414 = scmp.lt.s32.totalorder %s2413, 47
          %s2415 = scalar_select %p2414, %s2413, 47
          %s2416 = smul.addr %s2415, 8
          %s2417 = scalar_lea.vmem %s10, %s2416
        $region92: #{tpu_custom_call.1} parent=87 // pred_fallthru
          _
      $region88: #{tpu_custom_call.1} parent=5 // pred_fallthru
        _
    $region6: #{tpu_custom_call.1} parent=1 // loop_footer
      %s22 = sadd.s32 1, %s18
    $region7: #{tpu_custom_call.1} parent=1 // loop_footer_branch
      %17 = sbr.rel target = $region3
    $region8: #{tpu_custom_call.1} parent=1 // loop_exit
      _
    %2418 = vsyncpa [#allocation5], 1
    %s2419 = scalar_lea.sflag [#allocation5], 1
    %2420 = vsyncpa %s2419, 1

</llo_original>
